<compile_context>
chip_gen: v7x
topology: tpu7x:2x2x1
jax: 0.10.0
libtpu: 0.0.40
codegen_flags: <defaults>
</compile_context>

<pallas_src>
import numpy as np
import jax
import jax.numpy as jnp
from jax import lax
from jax.experimental import pallas as pl
from jax.experimental.pallas import tpu as pltpu

# ---- problem sizes (small, TPU-friendly) -----------------------------------
B = 2          # batch
T = 64         # sequence length (time)
C = 128        # in_features == hidden_channels
NUM_LAYERS = 2
N = B * T      # number of graph nodes after view(-1, C)
NEG_SLOPE = 0.2
LN_EPS = 1e-5
MXU_W = 256    # padded output width for the fused GAT projection (v6e/v7x MXU)

# packed-parameter row layout: [bt, gamma, beta, bg[0..L-1], asrc[0..L-1], pad]
_P_BT, _P_GAMMA, _P_BETA, _P_BG0 = 0, 1, 2, 3
_P_ASRC0 = 3 + NUM_LAYERS
_P_ROWS = 3 + 2 * NUM_LAYERS
_P_ROWS_PAD = ((_P_ROWS + 7) // 8) * 8


# ---- Pallas kernel ----------------------------------------------------------
def basic_gat_kernel(x3_ref, mask_ref, wt3_ref, wge_ref, params_ref, out_ref):
    # x3_ref:     (N, 3C) bf16 = [x_prev | x | x_next] time-shifted taps (lane concat)
    # mask_ref:   (N, N)  bf16 additive adjacency bias: 0 on edges/self-loops, -1e30 else
    # wt3_ref:    (3C, C) bf16 = [W0; W1; W2] stacked temporal-conv taps
    # wge_ref:    (L, C, 256) bf16 = [wg[l] | wg[l]@adst[l]^T | 0-pad]
    # params_ref: (8, C)  f32 packed small params
    x3 = x3_ref[...]                                      # (N, 3C) bf16
    w3 = wt3_ref[...]                                     # (3C, C) bf16
    bt = params_ref[_P_BT:_P_BT + 1, :]                   # (1, C) f32
    gamma = params_ref[_P_GAMMA:_P_GAMMA + 1, :]          # (1, C) f32
    beta = params_ref[_P_BETA:_P_BETA + 1, :]             # (1, C) f32
    mask = mask_ref[...].astype(jnp.float32)              # (N, N) f32 additive mask

    # --- temporal conv #1 (single fused-tap bf16 matmul) + residual + relu ---
    conv1 = jnp.dot(x3, w3, preferred_element_type=jnp.float32) + bt      # (N, C)
    residual = x3[:, C:2 * C].astype(jnp.float32)                         # center tap == x
    h = jnp.maximum(conv1 + residual, 0.0)                                # (N, C) f32

    # --- GATConv layers (heads=1, dense-adjacency formulation) ---------------
    for l in range(NUM_LAYERS):
        bg_l = params_ref[_P_BG0 + l:_P_BG0 + l + 1, :]                   # (1, C)
        asrc_l = params_ref[_P_ASRC0 + l:_P_ASRC0 + l + 1, :]             # (1, C)

        # fused projection: columns [0:C] = hp = h@W, column C = a_dst = hp.adst
        hp_ext = jnp.dot(h.astype(jnp.bfloat16), wge_ref[l],
                         preferred_element_type=jnp.float32)              # (N, 256)
        hp = hp_ext[:, :C]                                                # (N, C)
        a_dst = hp_ext[:, C:C + 1]                                        # (N, 1)
        # a_src[j] = asrc . hp[j]  (tiny M=1 f32 matmul -> (1, N))
        a_src = lax.dot_general(asrc_l, hp,
                                dimension_numbers=(((1,), (1,)), ((), ())),
                                preferred_element_type=jnp.float32)       # (1, N)

        e = a_dst + a_src                                                 # (N, N) f32
        e = jnp.where(e >= 0.0, e, NEG_SLOPE * e)                         # LeakyReLU(0.2)
        e = e + mask                                                      # additive adj mask
        e = e - jnp.max(e, axis=1, keepdims=True)                         # softmax over sources
        p = jnp.exp(e)
        s = jnp.sum(p, axis=1, keepdims=True)
        inv = pl.reciprocal(s, approx=True)                               # EUP reciprocal
        inv = inv * (2.0 - s * inv)                                       # one NR refinement
        agg = jnp.dot(p.astype(jnp.bfloat16), hp.astype(jnp.bfloat16),
                      preferred_element_type=jnp.float32)                 # (N, C)
        h = jnp.maximum(agg * inv + bg_l, 0.0)                            # normalize+bias+relu

    # --- temporal conv #2: only t=0 of each batch survives -------------------
    # y0[b] = h[b*T] @ W1 + h[b*T+1] @ W2 + bt   (the t-1 tap is the zero pad)
    # rows b*T, b*T+1 are compile-time constants -> static sublane slices.
    h_t0 = jnp.concatenate([h[b * T:b * T + 1, :] for b in range(B)], axis=0)      # (B, C)
    h_t1 = jnp.concatenate([h[b * T + 1:b * T + 2, :] for b in range(B)], axis=0)  # (B, C)
    h_cat = jnp.concatenate([h_t0, h_t1], axis=-1).astype(jnp.bfloat16)            # (B, 2C)
    w12 = wt3_ref[C:, :]                                                            # (2C, C) = [W1; W2]
    y0 = jnp.dot(h_cat, w12, preferred_element_type=jnp.float32) + bt               # (B, C)

    # --- LayerNorm(hidden) + relu --------------------------------------------
    mu = jnp.mean(y0, axis=-1, keepdims=True)
    var = jnp.mean((y0 - mu) ** 2, axis=-1, keepdims=True)
    yn = (y0 - mu) * lax.rsqrt(var + LN_EPS)
    yn = yn * gamma + beta
    out_ref[...] = jnp.maximum(yn, 0.0)


# ---- wrapper (host-side glue + pallas_call) ---------------------------------
def basic_gat_forward(x_btc, adj, params):
    (wt, bt, wg, asrc, adst, bg, gamma, beta) = params
    assert T >= 2, "t=0 output of the second temporal conv needs T >= 2"

    # +-1 time-shifted taps of the raw input, lane-concatenated, bf16
    zpad = jnp.zeros((B, 1, C), jnp.float32)
    x_prev = jnp.concatenate([zpad, x_btc[:, :-1, :]], axis=1).reshape(N, C)
    x_next = jnp.concatenate([x_btc[:, 1:, :], zpad], axis=1).reshape(N, C)
    x3 = jnp.concatenate([x_prev, x_btc.reshape(N, C), x_next],
                         axis=-1).astype(jnp.bfloat16)                    # (N, 3C)

    wt3 = wt.reshape(3 * C, C).astype(jnp.bfloat16)                        # (3C, C)

    # fold attention dst vector into the GAT weight; pad output lanes to 256
    cols_dst = jnp.einsum('lio,lo->li', wg, adst[:, 0, :])[..., None]      # (L, C, 1)
    pad = jnp.zeros((NUM_LAYERS, C, MXU_W - C - 1), jnp.float32)
    wg_ext = jnp.concatenate([wg, cols_dst, pad], axis=-1).astype(jnp.bfloat16)  # (L, C, 256)

    # additive adjacency mask: 0 on edges (incl. self-loops), -1e30 elsewhere
    mask = jnp.where(adj > 0.0, 0.0, -1e30).astype(jnp.bfloat16)           # (N, N)

    # pack all tiny per-channel params into one (8, C) f32 block
    params_packed = jnp.concatenate(
        [bt, gamma, beta,
         bg.reshape(NUM_LAYERS, C),
         asrc.reshape(NUM_LAYERS, C),
         jnp.zeros((_P_ROWS_PAD - _P_ROWS, C), jnp.float32)], axis=0)      # (8, C)

    flops = (2 * N * (3 * C) * C
             + NUM_LAYERS * (2 * N * C * MXU_W + 2 * N * C + 2 * N * N * C)
             + 2 * B * (2 * C) * C)
    bytes_accessed = (x3.size * 2 + mask.size * 2 + wt3.size * 2
                      + wg_ext.size * 2 + params_packed.size * 4 + B * C * 4)

    return pl.pallas_call(
        basic_gat_kernel,
        out_shape=jax.ShapeDtypeStruct((B, C), jnp.float32),
        in_specs=[pl.BlockSpec(memory_space=pltpu.MemorySpace.VMEM)] * 5,
        out_specs=pl.BlockSpec(memory_space=pltpu.MemorySpace.VMEM),
        cost_estimate=pl.CostEstimate(flops=flops,
                                      transcendentals=NUM_LAYERS * N * N,
                                      bytes_accessed=bytes_accessed),
    )(x3, mask, wt3, wg_ext, params_packed)


# ---- pure-JAX reference (mirrors the kernel's math, incl. bf16 operands) ----
def reference_forward(x_btc, adj, params):
    (wt, bt, wg, asrc, adst, bg, gamma, beta) = params
    bf = jnp.bfloat16

    zpad = jnp.zeros((B, 1, C), jnp.float32)
    x_prev = jnp.concatenate([zpad, x_btc[:, :-1, :]], axis=1).reshape(N, C)
    x_next = jnp.concatenate([x_btc[:, 1:, :], zpad], axis=1).reshape(N, C)
    x3 = jnp.concatenate([x_prev, x_btc.reshape(N, C), x_next], axis=-1).astype(bf)
    wt3 = wt.reshape(3 * C, C).astype(bf)
    mask = jnp.where(adj > 0.0, 0.0, -1e30).astype(bf).astype(jnp.float32)

    h = jnp.dot(x3, wt3, preferred_element_type=jnp.float32) + bt
    h = jnp.maximum(h + x3[:, C:2 * C].astype(jnp.float32), 0.0)
    for l in range(NUM_LAYERS):
        wg_bf = wg[l].astype(bf)
        col_dst = (wg[l] @ adst[l].T).astype(bf)                 # same host fold + rounding
        h_bf = h.astype(bf)
        hp = jnp.dot(h_bf, wg_bf, preferred_element_type=jnp.float32)
        a_dst = jnp.dot(h_bf, col_dst, preferred_element_type=jnp.float32)    # (N, 1)
        a_src = jnp.sum(hp * asrc[l], axis=-1, keepdims=True).T               # (1, N)
        e = a_dst + a_src
        e = jnp.where(e >= 0.0, e, NEG_SLOPE * e)
        e = e + mask
        e = e - jnp.max(e, axis=1, keepdims=True)
        p = jnp.exp(e)
        agg = jnp.dot(p.astype(bf), hp.astype(bf), preferred_element_type=jnp.float32)
        h = jnp.maximum(agg / jnp.sum(p, axis=1, keepdims=True) + bg[l], 0.0)
    hr = h.reshape(B, T, C)
    h_cat = jnp.concatenate([hr[:, 0, :], hr[:, 1, :]], axis=-1).astype(bf)
    y0 = jnp.dot(h_cat, wt3[C:, :], preferred_element_type=jnp.float32) + bt
    mu = jnp.mean(y0, axis=-1, keepdims=True)
    var = jnp.mean((y0 - mu) ** 2, axis=-1, keepdims=True)
    yn = (y0 - mu) / jnp.sqrt(var + LN_EPS) * gamma + beta
    return jnp.maximum(yn, 0.0)


if __name__ == "__main__":
    key = jax.random.PRNGKey(0)
    k_x, k_wt, k_bt, k_wg, k_as, k_ad = jax.random.split(key, 6)

    # input like the torch module expects: (B, 1, T, in_features)
    x = jax.random.normal(k_x, (B, 1, T, C), jnp.float32)
    x_btc = x[:, 0, :, :]                                   # x.squeeze(1): (B, T, C)

    # deterministic edge_index (2, E): bidirectional chain + skip edges per batch
    src_list, dst_list = [], []
    for b in range(B):
        base = b * T
        for t in range(T - 1):
            src_list += [base + t, base + t + 1]
            dst_list += [base + t + 1, base + t]
        for t in range(T - 4):
            src_list.append(base + t)
            dst_list.append(base + t + 4)
    edge_index = jnp.asarray(np.array([src_list, dst_list], dtype=np.int32))

    # dense adjacency with self loops (glue, outside the kernel)
    adj = jnp.zeros((N, N), jnp.float32)
    adj = adj.at[edge_index[1], edge_index[0]].set(1.0)     # row = dst, col = src
    adj = adj.at[jnp.arange(N), jnp.arange(N)].set(1.0)     # GATConv add_self_loops

    # deterministic parameter init (shapes from __init__; synthetic values)
    wt = jax.random.normal(k_wt, (3, C, C), jnp.float32) / np.sqrt(3 * C)   # temporal_conv taps
    bt = jax.random.normal(k_bt, (1, C), jnp.float32) * 0.01                # temporal_conv bias
    wg = jax.random.normal(k_wg, (NUM_LAYERS, C, C), jnp.float32) / np.sqrt(C)   # GATConv lin
    asrc = jax.random.normal(k_as, (NUM_LAYERS, 1, C), jnp.float32) / np.sqrt(C)  # att_src
    adst = jax.random.normal(k_ad, (NUM_LAYERS, 1, C), jnp.float32) / np.sqrt(C)  # att_dst
    bg = jnp.zeros((NUM_LAYERS, 1, C), jnp.float32)                          # GATConv bias
    gamma = jnp.ones((1, C), jnp.float32)                                    # LayerNorm weight
    beta = jnp.zeros((1, C), jnp.float32)                                    # LayerNorm bias
    params = (wt, bt, wg, asrc, adst, bg, gamma, beta)

    out = jax.jit(basic_gat_forward)(x_btc, adj, params)
    out = jax.block_until_ready(out)

    ref = jax.block_until_ready(reference_forward(x_btc, adj, params))

    assert out.shape == (B, C)
    assert bool(jnp.all(jnp.isfinite(out)))
    np.testing.assert_allclose(np.asarray(out), np.asarray(ref), rtol=2e-2, atol=2e-2)

    print("KERNEL_OK")
</pallas_src>

<mosaic_0001>
module attributes {stable_mosaic.version = 11 : i64} {
  func.func @basic_gat_kernel(%arg0: memref<128x384xbf16, #tpu.memory_space<vmem>>, %arg1: memref<128x128xbf16, #tpu.memory_space<vmem>>, %arg2: memref<384x128xbf16, #tpu.memory_space<vmem>>, %arg3: memref<2x128x256xbf16, #tpu.memory_space<vmem>>, %arg4: memref<8x128xf32, #tpu.memory_space<vmem>>, %arg5: memref<2x128xf32, #tpu.memory_space<vmem>>) attributes {dimension_semantics = [], scalar_prefetch = 0 : i64, scratch_operands = 0 : i64, tpu.core_type = #tpu.core_type<tc>} {
    %c0 = arith.constant 0 : index
    %c0_0 = arith.constant 0 : index
    %0 = vector.load %arg0[%c0, %c0_0] : memref<128x384xbf16, #tpu.memory_space<vmem>>, vector<128x384xbf16>
    %c0_1 = arith.constant 0 : index
    %c0_2 = arith.constant 0 : index
    %1 = vector.load %arg2[%c0_1, %c0_2] : memref<384x128xbf16, #tpu.memory_space<vmem>>, vector<384x128xbf16>
    %c0_3 = arith.constant 0 : index
    %c0_4 = arith.constant 0 : index
    %2 = vector.load %arg4[%c0_3, %c0_4] : memref<8x128xf32, #tpu.memory_space<vmem>>, vector<1x128xf32>
    %c1 = arith.constant 1 : index
    %c0_5 = arith.constant 0 : index
    %3 = vector.load %arg4[%c1, %c0_5] : memref<8x128xf32, #tpu.memory_space<vmem>>, vector<1x128xf32>
    %c2 = arith.constant 2 : index
    %c0_6 = arith.constant 0 : index
    %4 = vector.load %arg4[%c2, %c0_6] : memref<8x128xf32, #tpu.memory_space<vmem>>, vector<1x128xf32>
    %c0_7 = arith.constant 0 : index
    %c0_8 = arith.constant 0 : index
    %5 = vector.load %arg1[%c0_7, %c0_8] : memref<128x128xbf16, #tpu.memory_space<vmem>>, vector<128x128xbf16>
    %6 = arith.extf %5 : vector<128x128xbf16> to vector<128x128xf32>
    %cst = arith.constant dense<0.000000e+00> : vector<128x128xf32>
    %7 = tpu.matmul %0, %1, %cst {dimension_numbers = #tpu.dot_dimension_numbers<[1], [0], [0], [1], [0, 0, 1, 1], [], []>} : vector<128x384xbf16>, vector<384x128xbf16>, vector<128x128xf32> -> vector<128x128xf32>
    %8 = vector.broadcast %2 : vector<1x128xf32> to vector<128x128xf32>
    %9 = arith.addf %7, %8 : vector<128x128xf32>
    %10 = vector.extract_strided_slice %0 {offsets = [0, 128], sizes = [128, 128], strides = [1, 1]} : vector<128x384xbf16> to vector<128x128xbf16>
    %11 = arith.extf %10 : vector<128x128xbf16> to vector<128x128xf32>
    %12 = arith.addf %9, %11 : vector<128x128xf32>
    %cst_9 = arith.constant 0.000000e+00 : f32
    %13 = vector.broadcast %cst_9 : f32 to vector<128x128xf32>
    %14 = arith.maximumf %12, %13 : vector<128x128xf32>
    %c3 = arith.constant 3 : index
    %c0_10 = arith.constant 0 : index
    %15 = vector.load %arg4[%c3, %c0_10] : memref<8x128xf32, #tpu.memory_space<vmem>>, vector<1x128xf32>
    %c5 = arith.constant 5 : index
    %c0_11 = arith.constant 0 : index
    %16 = vector.load %arg4[%c5, %c0_11] : memref<8x128xf32, #tpu.memory_space<vmem>>, vector<1x128xf32>
    %17 = arith.truncf %14 : vector<128x128xf32> to vector<128x128xbf16>
    %c0_12 = arith.constant 0 : index
    %c0_13 = arith.constant 0 : index
    %c0_14 = arith.constant 0 : index
    %18 = vector.load %arg3[%c0_12, %c0_13, %c0_14] : memref<2x128x256xbf16, #tpu.memory_space<vmem>>, vector<1x128x256xbf16>
    %19 = vector.shape_cast %18 : vector<1x128x256xbf16> to vector<128x256xbf16>
    %cst_15 = arith.constant dense<0.000000e+00> : vector<128x256xf32>
    %20 = tpu.matmul %17, %19, %cst_15 {dimension_numbers = #tpu.dot_dimension_numbers<[1], [0], [0], [1], [0, 0, 1, 1], [], []>} : vector<128x128xbf16>, vector<128x256xbf16>, vector<128x256xf32> -> vector<128x256xf32>
    %21 = vector.extract_strided_slice %20 {offsets = [0, 0], sizes = [128, 128], strides = [1, 1]} : vector<128x256xf32> to vector<128x128xf32>
    %22 = vector.extract_strided_slice %20 {offsets = [0, 128], sizes = [128, 1], strides = [1, 1]} : vector<128x256xf32> to vector<128x1xf32>
    %cst_16 = arith.constant dense<0.000000e+00> : vector<1x128xf32>
    %23 = tpu.matmul %16, %21, %cst_16 {dimension_numbers = #tpu.dot_dimension_numbers<[1], [1], [0], [0], [0, 0, 1, 0], [], []>} : vector<1x128xf32>, vector<128x128xf32>, vector<1x128xf32> -> vector<1x128xf32>
    %24 = vector.broadcast %22 : vector<128x1xf32> to vector<128x128xf32>
    %25 = vector.broadcast %23 : vector<1x128xf32> to vector<128x128xf32>
    %26 = arith.addf %24, %25 : vector<128x128xf32>
    %cst_17 = arith.constant 0.000000e+00 : f32
    %27 = vector.broadcast %cst_17 : f32 to vector<128x128xf32>
    %28 = arith.cmpf oge, %26, %27 : vector<128x128xf32>
    %cst_18 = arith.constant 2.000000e-01 : f32
    %29 = vector.broadcast %cst_18 : f32 to vector<128x128xf32>
    %30 = arith.mulf %29, %26 : vector<128x128xf32>
    %31 = arith.select %28, %26, %30 : vector<128x128xi1>, vector<128x128xf32>
    %32 = arith.addf %31, %6 : vector<128x128xf32>
    %cst_19 = arith.constant dense<0xFF800000> : vector<128xf32>
    %33 = vector.multi_reduction <maximumf>, %32, %cst_19 [1] : vector<128x128xf32> to vector<128xf32>
    %34 = vector.shape_cast %33 : vector<128xf32> to vector<128x1xf32>
    %35 = vector.broadcast %34 : vector<128x1xf32> to vector<128x128xf32>
    %36 = arith.subf %32, %35 : vector<128x128xf32>
    %37 = math.exp %36 : vector<128x128xf32>
    %cst_20 = arith.constant dense<0.000000e+00> : vector<128xf32>
    %38 = vector.multi_reduction <add>, %37, %cst_20 [1] : vector<128x128xf32> to vector<128xf32>
    %39 = vector.shape_cast %38 : vector<128xf32> to vector<128x1xf32>
    %40 = tpu.reciprocal %39 {approx = true} : vector<128x1xf32> -> vector<128x1xf32>
    %41 = arith.mulf %39, %40 : vector<128x1xf32>
    %cst_21 = arith.constant 2.000000e+00 : f32
    %42 = vector.broadcast %cst_21 : f32 to vector<128x1xf32>
    %43 = arith.subf %42, %41 : vector<128x1xf32>
    %44 = arith.mulf %40, %43 : vector<128x1xf32>
    %45 = arith.truncf %37 : vector<128x128xf32> to vector<128x128xbf16>
    %46 = arith.truncf %21 : vector<128x128xf32> to vector<128x128xbf16>
    %cst_22 = arith.constant dense<0.000000e+00> : vector<128x128xf32>
    %47 = tpu.matmul %45, %46, %cst_22 {dimension_numbers = #tpu.dot_dimension_numbers<[1], [0], [0], [1], [0, 0, 1, 1], [], []>} : vector<128x128xbf16>, vector<128x128xbf16>, vector<128x128xf32> -> vector<128x128xf32>
    %48 = vector.broadcast %44 : vector<128x1xf32> to vector<128x128xf32>
    %49 = arith.mulf %47, %48 : vector<128x128xf32>
    %50 = vector.broadcast %15 : vector<1x128xf32> to vector<128x128xf32>
    %51 = arith.addf %49, %50 : vector<128x128xf32>
    %cst_23 = arith.constant 0.000000e+00 : f32
    %52 = vector.broadcast %cst_23 : f32 to vector<128x128xf32>
    %53 = arith.maximumf %51, %52 : vector<128x128xf32>
    %c4 = arith.constant 4 : index
    %c0_24 = arith.constant 0 : index
    %54 = vector.load %arg4[%c4, %c0_24] : memref<8x128xf32, #tpu.memory_space<vmem>>, vector<1x128xf32>
    %c6 = arith.constant 6 : index
    %c0_25 = arith.constant 0 : index
    %55 = vector.load %arg4[%c6, %c0_25] : memref<8x128xf32, #tpu.memory_space<vmem>>, vector<1x128xf32>
    %56 = arith.truncf %53 : vector<128x128xf32> to vector<128x128xbf16>
    %c1_26 = arith.constant 1 : index
    %c0_27 = arith.constant 0 : index
    %c0_28 = arith.constant 0 : index
    %57 = vector.load %arg3[%c1_26, %c0_27, %c0_28] : memref<2x128x256xbf16, #tpu.memory_space<vmem>>, vector<1x128x256xbf16>
    %58 = vector.shape_cast %57 : vector<1x128x256xbf16> to vector<128x256xbf16>
    %cst_29 = arith.constant dense<0.000000e+00> : vector<128x256xf32>
    %59 = tpu.matmul %56, %58, %cst_29 {dimension_numbers = #tpu.dot_dimension_numbers<[1], [0], [0], [1], [0, 0, 1, 1], [], []>} : vector<128x128xbf16>, vector<128x256xbf16>, vector<128x256xf32> -> vector<128x256xf32>
    %60 = vector.extract_strided_slice %59 {offsets = [0, 0], sizes = [128, 128], strides = [1, 1]} : vector<128x256xf32> to vector<128x128xf32>
    %61 = vector.extract_strided_slice %59 {offsets = [0, 128], sizes = [128, 1], strides = [1, 1]} : vector<128x256xf32> to vector<128x1xf32>
    %cst_30 = arith.constant dense<0.000000e+00> : vector<1x128xf32>
    %62 = tpu.matmul %55, %60, %cst_30 {dimension_numbers = #tpu.dot_dimension_numbers<[1], [1], [0], [0], [0, 0, 1, 0], [], []>} : vector<1x128xf32>, vector<128x128xf32>, vector<1x128xf32> -> vector<1x128xf32>
    %63 = vector.broadcast %61 : vector<128x1xf32> to vector<128x128xf32>
    %64 = vector.broadcast %62 : vector<1x128xf32> to vector<128x128xf32>
    %65 = arith.addf %63, %64 : vector<128x128xf32>
    %cst_31 = arith.constant 0.000000e+00 : f32
    %66 = vector.broadcast %cst_31 : f32 to vector<128x128xf32>
    %67 = arith.cmpf oge, %65, %66 : vector<128x128xf32>
    %cst_32 = arith.constant 2.000000e-01 : f32
    %68 = vector.broadcast %cst_32 : f32 to vector<128x128xf32>
    %69 = arith.mulf %68, %65 : vector<128x128xf32>
    %70 = arith.select %67, %65, %69 : vector<128x128xi1>, vector<128x128xf32>
    %71 = arith.addf %70, %6 : vector<128x128xf32>
    %cst_33 = arith.constant dense<0xFF800000> : vector<128xf32>
    %72 = vector.multi_reduction <maximumf>, %71, %cst_33 [1] : vector<128x128xf32> to vector<128xf32>
    %73 = vector.shape_cast %72 : vector<128xf32> to vector<128x1xf32>
    %74 = vector.broadcast %73 : vector<128x1xf32> to vector<128x128xf32>
    %75 = arith.subf %71, %74 : vector<128x128xf32>
    %76 = math.exp %75 : vector<128x128xf32>
    %cst_34 = arith.constant dense<0.000000e+00> : vector<128xf32>
    %77 = vector.multi_reduction <add>, %76, %cst_34 [1] : vector<128x128xf32> to vector<128xf32>
    %78 = vector.shape_cast %77 : vector<128xf32> to vector<128x1xf32>
    %79 = tpu.reciprocal %78 {approx = true} : vector<128x1xf32> -> vector<128x1xf32>
    %80 = arith.mulf %78, %79 : vector<128x1xf32>
    %cst_35 = arith.constant 2.000000e+00 : f32
    %81 = vector.broadcast %cst_35 : f32 to vector<128x1xf32>
    %82 = arith.subf %81, %80 : vector<128x1xf32>
    %83 = arith.mulf %79, %82 : vector<128x1xf32>
    %84 = arith.truncf %76 : vector<128x128xf32> to vector<128x128xbf16>
    %85 = arith.truncf %60 : vector<128x128xf32> to vector<128x128xbf16>
    %cst_36 = arith.constant dense<0.000000e+00> : vector<128x128xf32>
    %86 = tpu.matmul %84, %85, %cst_36 {dimension_numbers = #tpu.dot_dimension_numbers<[1], [0], [0], [1], [0, 0, 1, 1], [], []>} : vector<128x128xbf16>, vector<128x128xbf16>, vector<128x128xf32> -> vector<128x128xf32>
    %87 = vector.broadcast %83 : vector<128x1xf32> to vector<128x128xf32>
    %88 = arith.mulf %86, %87 : vector<128x128xf32>
    %89 = vector.broadcast %54 : vector<1x128xf32> to vector<128x128xf32>
    %90 = arith.addf %88, %89 : vector<128x128xf32>
    %cst_37 = arith.constant 0.000000e+00 : f32
    %91 = vector.broadcast %cst_37 : f32 to vector<128x128xf32>
    %92 = arith.maximumf %90, %91 : vector<128x128xf32>
    %93 = vector.extract_strided_slice %92 {offsets = [0, 0], sizes = [1, 128], strides = [1, 1]} : vector<128x128xf32> to vector<1x128xf32>
    %94 = vector.extract_strided_slice %92 {offsets = [64, 0], sizes = [1, 128], strides = [1, 1]} : vector<128x128xf32> to vector<1x128xf32>
    %95 = tpu.concatenate %93, %94 in 0 : vector<1x128xf32>, vector<1x128xf32> -> vector<2x128xf32>
    %96 = vector.extract_strided_slice %92 {offsets = [1, 0], sizes = [1, 128], strides = [1, 1]} : vector<128x128xf32> to vector<1x128xf32>
    %97 = vector.extract_strided_slice %92 {offsets = [65, 0], sizes = [1, 128], strides = [1, 1]} : vector<128x128xf32> to vector<1x128xf32>
    %98 = tpu.concatenate %96, %97 in 0 : vector<1x128xf32>, vector<1x128xf32> -> vector<2x128xf32>
    %99 = tpu.concatenate %95, %98 in 1 : vector<2x128xf32>, vector<2x128xf32> -> vector<2x256xf32>
    %100 = arith.truncf %99 : vector<2x256xf32> to vector<2x256xbf16>
    %c128 = arith.constant 128 : index
    %c0_38 = arith.constant 0 : index
    %101 = vector.load %arg2[%c128, %c0_38] : memref<384x128xbf16, #tpu.memory_space<vmem>>, vector<256x128xbf16>
    %cst_39 = arith.constant dense<0.000000e+00> : vector<2x128xf32>
    %102 = tpu.matmul %100, %101, %cst_39 {dimension_numbers = #tpu.dot_dimension_numbers<[1], [0], [0], [1], [0, 0, 1, 1], [], []>} : vector<2x256xbf16>, vector<256x128xbf16>, vector<2x128xf32> -> vector<2x128xf32>
    %103 = vector.broadcast %2 : vector<1x128xf32> to vector<2x128xf32>
    %104 = arith.addf %102, %103 : vector<2x128xf32>
    %cst_40 = arith.constant dense<0.000000e+00> : vector<2xf32>
    %105 = vector.multi_reduction <add>, %104, %cst_40 [1] : vector<2x128xf32> to vector<2xf32>
    %106 = vector.shape_cast %105 : vector<2xf32> to vector<2x1xf32>
    %cst_41 = arith.constant 1.280000e+02 : f32
    %107 = vector.broadcast %cst_41 : f32 to vector<2x1xf32>
    %108 = arith.divf %106, %107 : vector<2x1xf32>
    %109 = vector.broadcast %108 : vector<2x1xf32> to vector<2x128xf32>
    %110 = arith.subf %104, %109 : vector<2x128xf32>
    %111 = arith.mulf %110, %110 : vector<2x128xf32>
    %cst_42 = arith.constant dense<0.000000e+00> : vector<2xf32>
    %112 = vector.multi_reduction <add>, %111, %cst_42 [1] : vector<2x128xf32> to vector<2xf32>
    %113 = vector.shape_cast %112 : vector<2xf32> to vector<2x1xf32>
    %cst_43 = arith.constant 1.280000e+02 : f32
    %114 = vector.broadcast %cst_43 : f32 to vector<2x1xf32>
    %115 = arith.divf %113, %114 : vector<2x1xf32>
    %116 = vector.broadcast %108 : vector<2x1xf32> to vector<2x128xf32>
    %117 = arith.subf %104, %116 : vector<2x128xf32>
    %cst_44 = arith.constant 9.99999974E-6 : f32
    %118 = vector.broadcast %cst_44 : f32 to vector<2x1xf32>
    %119 = arith.addf %115, %118 : vector<2x1xf32>
    %120 = math.rsqrt %119 : vector<2x1xf32>
    %121 = vector.broadcast %120 : vector<2x1xf32> to vector<2x128xf32>
    %122 = arith.mulf %117, %121 : vector<2x128xf32>
    %123 = vector.broadcast %3 : vector<1x128xf32> to vector<2x128xf32>
    %124 = arith.mulf %122, %123 : vector<2x128xf32>
    %125 = vector.broadcast %4 : vector<1x128xf32> to vector<2x128xf32>
    %126 = arith.addf %124, %125 : vector<2x128xf32>
    %cst_45 = arith.constant 0.000000e+00 : f32
    %127 = vector.broadcast %cst_45 : f32 to vector<2x128xf32>
    %128 = arith.maximumf %126, %127 : vector<2x128xf32>
    %c0_46 = arith.constant 0 : index
    %c0_47 = arith.constant 0 : index
    %129 = vector.load %arg5[%c0_46, %c0_47] : memref<2x128xf32, #tpu.memory_space<vmem>>, vector<2x128xf32>
    tpu.vector_store %arg5[%c0_46, %c0_47], %128 {strides = array<i32>} : memref<2x128xf32, #tpu.memory_space<vmem>>, vector<2x128xf32>,
    return
  }
}

</mosaic_0001>

<llo_original>
// kernel: basic_gat_forward.1
$region0: #{basic_gat_forward.1}
  #allocation0 [shape = 'u32[]', space=smem, size = 0x4, offset = 0x4, fixed_abs, tag = 'smem constant byte address 0x4 - core index']
  #allocation1 [shape = 'u32[144,128]{1,0:T(1,128)}', space=vmem, size = 0x12000, scoped, tag = 'internal scratch']
  %s0 = inlined_call_operand.vmem [shape: bf16[128,384], index: 0, kind: input, shape index: {}]
  %s1 = inlined_call_operand.vmem [shape: bf16[128,128], index: 1, kind: input, shape index: {}]
  %s2 = inlined_call_operand.vmem [shape: bf16[384,128], index: 2, kind: input, shape index: {}]
  %s3 = inlined_call_operand.vmem [shape: bf16[2,128,256], index: 3, kind: input, shape index: {}]
  %s4 = inlined_call_operand.vmem [shape: f32[8,128], index: 4, kind: input, shape index: {}]
  %s5 = inlined_call_operand.hbm [shape: f32[2,128], index: 5, kind: output, shape index: {}]
  %s6 = sld [smem:[#allocation0]]
  $region30: #{basic_gat_forward.1} parent=0
    _
  %s8 = ssub.s32 1, %s6
  %s9 = scalar_select 0, %s8, %s6
  $region1: #{basic_gat_forward.1} parent=0
    #allocation2 [shape = 'u8[1024]{0}', space=vmem, size = 0x400, scoped, tag = 'output window, operand 0, single buffered']
    #allocation3 [shape = 's32[1]{0}', space=sflag, size = 0x4, scoped, tag = 'scoped memory for basic_gat_forward.1']
    %10 = vsyncpa [#allocation3], 0
    // Predicated region
    $region2: #{basic_gat_forward.1} parent=1 // pred_check
      _
    $region3: #{basic_gat_forward.1} parent=1 // pred_check_branch
      %12 = sbr.rel (0) target = $region5
    $region4: #{basic_gat_forward.1} parent=1 // pred_region
      _
    $region5: #{basic_gat_forward.1} parent=1 // pred_fallthru
      _
    // Predicated region
    $region6: #{basic_gat_forward.1} parent=1 // pred_check
      _
    $region7: #{basic_gat_forward.1} parent=1 // pred_check_branch
      %14 = sbr.rel (0) target = $region9
    $region8: #{basic_gat_forward.1} parent=1 // pred_region
      _
    $region9: #{basic_gat_forward.1} parent=1 // pred_fallthru
      _
    // Predicated region
    $region10: #{basic_gat_forward.1} parent=1 // pred_check
      _
    $region11: #{basic_gat_forward.1} parent=1 // pred_check_branch
      %16 = sbr.rel (0) target = $region13
    $region12: #{basic_gat_forward.1} parent=1 // pred_region
      _
    $region13: #{basic_gat_forward.1} parent=1 // pred_fallthru
      _
    // Predicated region
    $region14: #{basic_gat_forward.1} parent=1 // pred_check
      _
    $region15: #{basic_gat_forward.1} parent=1 // pred_check_branch
      %18 = sbr.rel (0) target = $region17
    $region16: #{basic_gat_forward.1} parent=1 // pred_region
      _
    $region17: #{basic_gat_forward.1} parent=1 // pred_fallthru
      _
    // Predicated region
    $region18: #{basic_gat_forward.1} parent=1 // pred_check
      _
    $region19: #{basic_gat_forward.1} parent=1 // pred_check_branch
      %20 = sbr.rel (0) target = $region21
    $region20: #{basic_gat_forward.1} parent=1 // pred_region
      _
    $region21: #{basic_gat_forward.1} parent=1 // pred_fallthru
      _
    %v22 = vld [vmem:[%s0] sm:$0xff]
    %v23 = vld [vmem:[%s0 + $0x8] sm:$0xf]
    %v24 = vld [vmem:[%s0 + $0xc] sm:$0xff]
    %v25 = vld [vmem:[%s0 + $0x14] sm:$0xf]
    %v26 = vld [vmem:[%s0 + $0x18] sm:$0xff]
    %v27 = vld [vmem:[%s0 + $0x20] sm:$0xf]
    %v28 = vld [vmem:[%s0 + $0x24] sm:$0xff]
    %v29 = vld [vmem:[%s0 + $0x2c] sm:$0xf]
    %v30 = vld [vmem:[%s0 + $0x30] sm:$0xff]
    %v31 = vld [vmem:[%s0 + $0x38] sm:$0xf]
    %v32 = vld [vmem:[%s0 + $0x3c] sm:$0xff]
    %v33 = vld [vmem:[%s0 + $0x44] sm:$0xf]
    %v34 = vld [vmem:[%s0 + $0x48] sm:$0xff]
    %v35 = vld [vmem:[%s0 + $0x50] sm:$0xf]
    %v36 = vld [vmem:[%s0 + $0x54] sm:$0xff]
    %v37 = vld [vmem:[%s0 + $0x5c] sm:$0xf]
    %v38 = vld [vmem:[%s0 + $0x60] sm:$0xff]
    %v39 = vld [vmem:[%s0 + $0x68] sm:$0xf]
    %v40 = vld [vmem:[%s0 + $0x6c] sm:$0xff]
    %v41 = vld [vmem:[%s0 + $0x74] sm:$0xf]
    %v42 = vld [vmem:[%s0 + $0x78] sm:$0xff]
    %v43 = vld [vmem:[%s0 + $0x80] sm:$0xf]
    %v44 = vld [vmem:[%s0 + $0x84] sm:$0xff]
    %v45 = vld [vmem:[%s0 + $0x8c] sm:$0xf]
    %v46 = vld [vmem:[%s0 + $0x90] sm:$0xff]
    %v47 = vld [vmem:[%s0 + $0x98] sm:$0xf]
    %v48 = vld [vmem:[%s0 + $0x9c] sm:$0xff]
    %v49 = vld [vmem:[%s0 + $0xa4] sm:$0xf]
    %v50 = vld [vmem:[%s0 + $0xa8] sm:$0xff]
    %v51 = vld [vmem:[%s0 + $0xb0] sm:$0xf]
    %v52 = vld [vmem:[%s0 + $0xb4] sm:$0xff]
    %v53 = vld [vmem:[%s0 + $0xbc] sm:$0xf]
    %v54 = vld [vmem:[%s2] sm:$0xf]
    %v55 = vld [vmem:[%s2 + $0x4] sm:$0xf]
    %v56 = vld [vmem:[%s2 + $0x8] sm:$0xf]
    %v57 = vld [vmem:[%s2 + $0xc] sm:$0xf]
    %v58 = vld [vmem:[%s2 + $0x10] sm:$0xf]
    %v59 = vld [vmem:[%s2 + $0x14] sm:$0xf]
    %v60 = vld [vmem:[%s2 + $0x18] sm:$0xf]
    %v61 = vld [vmem:[%s2 + $0x1c] sm:$0xf]
    %v62 = vld [vmem:[%s2 + $0x20] sm:$0xf]
    %v63 = vld [vmem:[%s2 + $0x24] sm:$0xf]
    %v64 = vld [vmem:[%s2 + $0x28] sm:$0xf]
    %v65 = vld [vmem:[%s2 + $0x2c] sm:$0xf]
    %v66 = vld [vmem:[%s2 + $0x30] sm:$0xf]
    %v67 = vld [vmem:[%s2 + $0x34] sm:$0xf]
    %v68 = vld [vmem:[%s2 + $0x38] sm:$0xf]
    %v69 = vld [vmem:[%s2 + $0x3c] sm:$0xf]
    %v70 = vld [vmem:[%s2 + $0x40] sm:$0xf]
    %v71 = vld [vmem:[%s2 + $0x44] sm:$0xf]
    %v72 = vld [vmem:[%s2 + $0x48] sm:$0xf]
    %v73 = vld [vmem:[%s2 + $0x4c] sm:$0xf]
    %v74 = vld [vmem:[%s2 + $0x50] sm:$0xf]
    %v75 = vld [vmem:[%s2 + $0x54] sm:$0xf]
    %v76 = vld [vmem:[%s2 + $0x58] sm:$0xf]
    %v77 = vld [vmem:[%s2 + $0x5c] sm:$0xf]
    %v78 = vld [vmem:[%s2 + $0x60] sm:$0xf]
    %v79 = vld [vmem:[%s2 + $0x64] sm:$0xf]
    %v80 = vld [vmem:[%s2 + $0x68] sm:$0xf]
    %v81 = vld [vmem:[%s2 + $0x6c] sm:$0xf]
    %v82 = vld [vmem:[%s2 + $0x70] sm:$0xf]
    %v83 = vld [vmem:[%s2 + $0x74] sm:$0xf]
    %v84 = vld [vmem:[%s2 + $0x78] sm:$0xf]
    %v85 = vld [vmem:[%s2 + $0x7c] sm:$0xf]
    %v86 = vld [vmem:[%s2 + $0x80] sm:$0xf]
    %v87 = vld [vmem:[%s2 + $0x84] sm:$0xf]
    %v88 = vld [vmem:[%s2 + $0x88] sm:$0xf]
    %v89 = vld [vmem:[%s2 + $0x8c] sm:$0xf]
    %v90 = vld [vmem:[%s2 + $0x90] sm:$0xf]
    %v91 = vld [vmem:[%s2 + $0x94] sm:$0xf]
    %v92 = vld [vmem:[%s2 + $0x98] sm:$0xf]
    %v93 = vld [vmem:[%s2 + $0x9c] sm:$0xf]
    %v94 = vld [vmem:[%s2 + $0xa0] sm:$0xf]
    %v95 = vld [vmem:[%s2 + $0xa4] sm:$0xf]
    %v96 = vld [vmem:[%s2 + $0xa8] sm:$0xf]
    %v97 = vld [vmem:[%s2 + $0xac] sm:$0xf]
    %v98 = vld [vmem:[%s2 + $0xb0] sm:$0xf]
    %v99 = vld [vmem:[%s2 + $0xb4] sm:$0xf]
    %v100 = vld [vmem:[%s2 + $0xb8] sm:$0xf]
    %v101 = vld [vmem:[%s2 + $0xbc] sm:$0xf]
    %v102 = vld [vmem:[%s4] sm:$0x1]
    %v103 = vld [vmem:[%s4 + $0x1] sm:$0x1]
    %v104 = vld [vmem:[%s4 + $0x2] sm:$0x1]
    %v105 = vld [vmem:[%s1] sm:$0xf]
    %v106 = vld [vmem:[%s1 + $0x4] sm:$0xf]
    %v107 = vld [vmem:[%s1 + $0x8] sm:$0xf]
    %v108 = vld [vmem:[%s1 + $0xc] sm:$0xf]
    %v109 = vld [vmem:[%s1 + $0x10] sm:$0xf]
    %v110 = vld [vmem:[%s1 + $0x14] sm:$0xf]
    %v111 = vld [vmem:[%s1 + $0x18] sm:$0xf]
    %v112 = vld [vmem:[%s1 + $0x1c] sm:$0xf]
    %v113 = vld [vmem:[%s1 + $0x20] sm:$0xf]
    %v114 = vld [vmem:[%s1 + $0x24] sm:$0xf]
    %v115 = vld [vmem:[%s1 + $0x28] sm:$0xf]
    %v116 = vld [vmem:[%s1 + $0x2c] sm:$0xf]
    %v117 = vld [vmem:[%s1 + $0x30] sm:$0xf]
    %v118 = vld [vmem:[%s1 + $0x34] sm:$0xf]
    %v119 = vld [vmem:[%s1 + $0x38] sm:$0xf]
    %v120 = vld [vmem:[%s1 + $0x3c] sm:$0xf]
    %v121 = vunpack.c.l.bf16 %v105
    %v122 = vunpack.c.l.bf16 %v106
    %v123 = vunpack.c.l.bf16 %v107
    %v124 = vunpack.c.l.bf16 %v108
    %v125 = vunpack.c.l.bf16 %v109
    %v126 = vunpack.c.l.bf16 %v110
    %v127 = vunpack.c.l.bf16 %v111
    %v128 = vunpack.c.l.bf16 %v112
    %v129 = vunpack.c.l.bf16 %v113
    %v130 = vunpack.c.l.bf16 %v114
    %v131 = vunpack.c.l.bf16 %v115
    %v132 = vunpack.c.l.bf16 %v116
    %v133 = vunpack.c.l.bf16 %v117
    %v134 = vunpack.c.l.bf16 %v118
    %v135 = vunpack.c.l.bf16 %v119
    %v136 = vunpack.c.l.bf16 %v120
    %v137 = vlaneseq
    %v138 = vshrl.u32 %v137, 7
    %v139 = vsub.s32 0, %v138
    %v140 = vrot.slane %v102, %v139
    %v173 = vunpack.c.l.b16 %v22
    %v174 = vunpack.c.h.b16 %v22
    %v175 = vunpack.c.l.b16 %v23
    %v176 = vunpack.c.l.b16 %v24
    %v177 = vunpack.c.h.b16 %v24
    %v178 = vunpack.c.l.b16 %v25
    %v179 = vunpack.c.l.b16 %v26
    %v180 = vunpack.c.h.b16 %v26
    %v181 = vunpack.c.l.b16 %v27
    %v182 = vunpack.c.l.b16 %v28
    %v183 = vunpack.c.h.b16 %v28
    %v184 = vunpack.c.l.b16 %v29
    %v185 = vunpack.c.l.b16 %v30
    %v186 = vunpack.c.h.b16 %v30
    %v187 = vunpack.c.l.b16 %v31
    %v188 = vunpack.c.l.b16 %v32
    %v189 = vunpack.c.h.b16 %v32
    %v190 = vunpack.c.l.b16 %v33
    %v191 = vunpack.c.l.b16 %v34
    %v192 = vunpack.c.h.b16 %v34
    %v193 = vunpack.c.l.b16 %v35
    %v194 = vunpack.c.l.b16 %v36
    %v195 = vunpack.c.h.b16 %v36
    %v196 = vunpack.c.l.b16 %v37
    %v197 = vunpack.c.l.b16 %v38
    %v198 = vunpack.c.h.b16 %v38
    %v199 = vunpack.c.l.b16 %v39
    %v200 = vunpack.c.l.b16 %v40
    %v201 = vunpack.c.h.b16 %v40
    %v202 = vunpack.c.l.b16 %v41
    %v203 = vunpack.c.l.b16 %v42
    %v204 = vunpack.c.h.b16 %v42
    %v205 = vunpack.c.l.b16 %v43
    %v206 = vunpack.c.l.b16 %v44
    %v207 = vunpack.c.h.b16 %v44
    %v208 = vunpack.c.l.b16 %v45
    %v209 = vunpack.c.l.b16 %v46
    %v210 = vunpack.c.h.b16 %v46
    %v211 = vunpack.c.l.b16 %v47
    %v212 = vunpack.c.l.b16 %v48
    %v213 = vunpack.c.h.b16 %v48
    %v214 = vunpack.c.l.b16 %v49
    %v215 = vunpack.c.l.b16 %v50
    %v216 = vunpack.c.h.b16 %v50
    %v217 = vunpack.c.l.b16 %v51
    %v218 = vunpack.c.l.b16 %v52
    %v219 = vunpack.c.h.b16 %v52
    %v220 = vunpack.c.l.b16 %v53
    %v221 = vpack.c.b16 %v176, %v173
    %v222 = vpack.c.b16 %v177, %v174
    %v223 = vpack.c.b16 %v178, %v175
    %v224 = vpack.c.b16 %v182, %v179
    %v225 = vpack.c.b16 %v183, %v180
    %v226 = vpack.c.b16 %v184, %v181
    %v227 = vpack.c.b16 %v188, %v185
    %v228 = vpack.c.b16 %v189, %v186
    %v229 = vpack.c.b16 %v190, %v187
    %v230 = vpack.c.b16 %v194, %v191
    %v231 = vpack.c.b16 %v195, %v192
    %v232 = vpack.c.b16 %v196, %v193
    %v233 = vpack.c.b16 %v200, %v197
    %v234 = vpack.c.b16 %v201, %v198
    %v235 = vpack.c.b16 %v202, %v199
    %v236 = vpack.c.b16 %v206, %v203
    %v237 = vpack.c.b16 %v207, %v204
    %v238 = vpack.c.b16 %v208, %v205
    %v239 = vpack.c.b16 %v212, %v209
    %v240 = vpack.c.b16 %v213, %v210
    %v241 = vpack.c.b16 %v214, %v211
    %v242 = vpack.c.b16 %v218, %v215
    %v243 = vpack.c.b16 %v219, %v216
    %v244 = vpack.c.b16 %v220, %v217
    %v317 = vunpack.c.l.b16 %v54
    %v318 = vunpack.c.l.b16 %v55
    %v319 = vunpack.c.l.b16 %v56
    %v320 = vunpack.c.l.b16 %v57
    %v321 = vunpack.c.l.b16 %v58
    %v322 = vunpack.c.l.b16 %v59
    %v323 = vunpack.c.l.b16 %v60
    %v324 = vunpack.c.l.b16 %v61
    %v325 = vunpack.c.l.b16 %v62
    %v326 = vunpack.c.l.b16 %v63
    %v327 = vunpack.c.l.b16 %v64
    %v328 = vunpack.c.l.b16 %v65
    %v329 = vunpack.c.l.b16 %v66
    %v330 = vunpack.c.l.b16 %v67
    %v331 = vunpack.c.l.b16 %v68
    %v332 = vunpack.c.l.b16 %v69
    %v333 = vunpack.c.l.b16 %v70
    %v334 = vunpack.c.l.b16 %v71
    %v335 = vunpack.c.l.b16 %v72
    %v336 = vunpack.c.l.b16 %v73
    %v337 = vunpack.c.l.b16 %v74
    %v338 = vunpack.c.l.b16 %v75
    %v339 = vunpack.c.l.b16 %v76
    %v340 = vunpack.c.l.b16 %v77
    %v341 = vunpack.c.l.b16 %v78
    %v342 = vunpack.c.l.b16 %v79
    %v343 = vunpack.c.l.b16 %v80
    %v344 = vunpack.c.l.b16 %v81
    %v345 = vunpack.c.l.b16 %v82
    %v346 = vunpack.c.l.b16 %v83
    %v347 = vunpack.c.l.b16 %v84
    %v348 = vunpack.c.l.b16 %v85
    %v349 = vunpack.c.l.b16 %v86
    %v350 = vunpack.c.l.b16 %v87
    %v351 = vunpack.c.l.b16 %v88
    %v352 = vunpack.c.l.b16 %v89
    %v353 = vunpack.c.l.b16 %v90
    %v354 = vunpack.c.l.b16 %v91
    %v355 = vunpack.c.l.b16 %v92
    %v356 = vunpack.c.l.b16 %v93
    %v357 = vunpack.c.l.b16 %v94
    %v358 = vunpack.c.l.b16 %v95
    %v359 = vunpack.c.l.b16 %v96
    %v360 = vunpack.c.l.b16 %v97
    %v361 = vunpack.c.l.b16 %v98
    %v362 = vunpack.c.l.b16 %v99
    %v363 = vunpack.c.l.b16 %v100
    %v364 = vunpack.c.l.b16 %v101
    %v365 = vpack.c.b16 %v318, %v317
    %v366 = vpack.c.b16 %v320, %v319
    %v367 = vpack.c.b16 %v322, %v321
    %v368 = vpack.c.b16 %v324, %v323
    %v369 = vpack.c.b16 %v326, %v325
    %v370 = vpack.c.b16 %v328, %v327
    %v371 = vpack.c.b16 %v330, %v329
    %v372 = vpack.c.b16 %v332, %v331
    %v373 = vpack.c.b16 %v334, %v333
    %v374 = vpack.c.b16 %v336, %v335
    %v375 = vpack.c.b16 %v338, %v337
    %v376 = vpack.c.b16 %v340, %v339
    %v377 = vpack.c.b16 %v342, %v341
    %v378 = vpack.c.b16 %v344, %v343
    %v379 = vpack.c.b16 %v346, %v345
    %v380 = vpack.c.b16 %v348, %v347
    %v381 = vpack.c.b16 %v350, %v349
    %v382 = vpack.c.b16 %v352, %v351
    %v383 = vpack.c.b16 %v354, %v353
    %v384 = vpack.c.b16 %v356, %v355
    %v385 = vpack.c.b16 %v358, %v357
    %v386 = vpack.c.b16 %v360, %v359
    %v387 = vpack.c.b16 %v362, %v361
    %v388 = vpack.c.b16 %v364, %v363
    %413 = vmatprep.subr.bf16.mxu0 0
    %414 = vmatpush1.bf16.msra.mxu0 %v365
    %415 = vmatprep.subr.bf16.mxu0 0
    %416 = vmatpush1.bf16.msra.mxu0 %v366
    %417 = vmatprep.subr.bf16.mxu0 0
    %418 = vmatpush1.bf16.msra.mxu0 %v367
    %419 = vmatprep.subr.bf16.mxu0 0
    %420 = vmatpush1.bf16.msra.mxu0 %v368
    %421 = vmatprep.subr.bf16.mxu0 0
    %422 = vmatpush1.bf16.msra.mxu0 %v369
    %423 = vmatprep.subr.bf16.mxu0 0
    %424 = vmatpush1.bf16.msra.mxu0 %v370
    %425 = vmatprep.subr.bf16.mxu0 0
    %426 = vmatpush1.bf16.msra.mxu0 %v371
    %427 = vmatprep.subr.bf16.mxu0 0
    %428 = vmatpush1.bf16.msra.mxu0 %v372
    %429 = vmatprep.subr.bf16.mxu0 0
    %430 = vmatpush1.bf16.msra.mxu0 %v373
    %431 = vmatprep.subr.bf16.mxu0 0
    %432 = vmatpush1.bf16.msra.mxu0 %v374
    %433 = vmatprep.subr.bf16.mxu0 0
    %434 = vmatpush1.bf16.msra.mxu0 %v375
    %435 = vmatprep.subr.bf16.mxu0 0
    %436 = vmatpush1.bf16.msra.mxu0 %v376
    %437 = vmatprep.subr.bf16.mxu0 0
    %438 = vmatpush1.bf16.msra.mxu0 %v377
    %439 = vmatprep.subr.bf16.mxu0 0
    %440 = vmatpush1.bf16.msra.mxu0 %v378
    %441 = vmatprep.subr.bf16.mxu0 0
    %442 = vmatpush1.bf16.msra.mxu0 %v379
    %443 = vmatprep.subr.bf16.mxu0 0
    %444 = vmatpush1.bf16.msra.mxu0 %v380
    %445 = vmatprep.mubr.bf16.mxu0 %v222
    %446 = vmatmul.mubr.bf16.gmra.mrb[0].mxu0 %v221
    %v447 = vpop.f32.mrb[0].mxu0
    %v448 = vadd.f32 %v140, %v447
    %v449 = vpop.f32.mrb[0].mxu0
    %v450 = vpop.f32.mrb[0].mxu0
    %v451 = vadd.f32 %v140, %v450
    %v452 = vpop.f32.mrb[0].mxu0
    %453 = vmatprep.mubr.bf16.mxu0 %v225
    %454 = vmatmul.mubr.bf16.gmra.mrb[0].mxu0 %v224
    %v455 = vpop.f32.mrb[0].mxu0
    %v456 = vadd.f32 %v140, %v455
    %v457 = vpop.f32.mrb[0].mxu0
    %v458 = vpop.f32.mrb[0].mxu0
    %v459 = vadd.f32 %v140, %v458
    %v460 = vpop.f32.mrb[0].mxu0
    %461 = vmatprep.mubr.bf16.mxu0 %v228
    %462 = vmatmul.mubr.bf16.gmra.mrb[0].mxu0 %v227
    %v463 = vpop.f32.mrb[0].mxu0
    %v464 = vadd.f32 %v140, %v463
    %v465 = vpop.f32.mrb[0].mxu0
    %v466 = vpop.f32.mrb[0].mxu0
    %v467 = vadd.f32 %v140, %v466
    %v468 = vpop.f32.mrb[0].mxu0
    %469 = vmatprep.mubr.bf16.mxu0 %v231
    %470 = vmatmul.mubr.bf16.gmra.mrb[0].mxu0 %v230
    %v471 = vpop.f32.mrb[0].mxu0
    %v472 = vadd.f32 %v140, %v471
    %v473 = vpop.f32.mrb[0].mxu0
    %v474 = vpop.f32.mrb[0].mxu0
    %v475 = vadd.f32 %v140, %v474
    %v476 = vpop.f32.mrb[0].mxu0
    %477 = vmatprep.mubr.bf16.mxu0 %v234
    %478 = vmatmul.mubr.bf16.gmra.mrb[0].mxu0 %v233
    %v479 = vpop.f32.mrb[0].mxu0
    %v480 = vadd.f32 %v140, %v479
    %v481 = vpop.f32.mrb[0].mxu0
    %v482 = vpop.f32.mrb[0].mxu0
    %v483 = vadd.f32 %v140, %v482
    %v484 = vpop.f32.mrb[0].mxu0
    %485 = vmatprep.mubr.bf16.mxu0 %v237
    %486 = vmatmul.mubr.bf16.gmra.mrb[0].mxu0 %v236
    %v487 = vpop.f32.mrb[0].mxu0
    %v488 = vadd.f32 %v140, %v487
    %v489 = vpop.f32.mrb[0].mxu0
    %v490 = vpop.f32.mrb[0].mxu0
    %v491 = vadd.f32 %v140, %v490
    %v492 = vpop.f32.mrb[0].mxu0
    %493 = vmatprep.mubr.bf16.mxu0 %v240
    %494 = vmatmul.mubr.bf16.gmra.mrb[0].mxu0 %v239
    %v495 = vpop.f32.mrb[0].mxu0
    %v496 = vadd.f32 %v140, %v495
    %v497 = vpop.f32.mrb[0].mxu0
    %v498 = vpop.f32.mrb[0].mxu0
    %v499 = vadd.f32 %v140, %v498
    %v500 = vpop.f32.mrb[0].mxu0
    %501 = vmatprep.mubr.bf16.mxu0 %v243
    %502 = vmatmul.mubr.bf16.gmra.mrb[0].mxu0 %v242
    %v503 = vpop.f32.mrb[0].mxu0
    %v504 = vadd.f32 %v140, %v503
    %v505 = vpop.f32.mrb[0].mxu0
    %v506 = vpop.f32.mrb[0].mxu0
    %v507 = vadd.f32 %v140, %v506
    %v508 = vpop.f32.mrb[0].mxu0
    %509 = vdwg.mxu0
    %510 = vmatprep.subr.bf16.mxu0 0
    %511 = vmatpush1.bf16.msra.mxu0 %v381
    %512 = vmatprep.subr.bf16.mxu0 0
    %513 = vmatpush1.bf16.msra.mxu0 %v382
    %514 = vmatprep.subr.bf16.mxu0 0
    %515 = vmatpush1.bf16.msra.mxu0 %v383
    %516 = vmatprep.subr.bf16.mxu0 0
    %517 = vmatpush1.bf16.msra.mxu0 %v384
    %518 = vmatprep.subr.bf16.mxu0 0
    %519 = vmatpush1.bf16.msra.mxu0 %v385
    %520 = vmatprep.subr.bf16.mxu0 0
    %521 = vmatpush1.bf16.msra.mxu0 %v386
    %522 = vmatprep.subr.bf16.mxu0 0
    %523 = vmatpush1.bf16.msra.mxu0 %v387
    %524 = vmatprep.subr.bf16.mxu0 0
    %525 = vmatpush1.bf16.msra.mxu0 %v388
    %526 = vmatprep.subr.bf16.mxu0 0
    %527 = vmatpush1.bf16.msra.mxu0 0
    %528 = vmatprep.subr.bf16.mxu0 0
    %529 = vmatpush1.bf16.msra.mxu0 0
    %530 = vmatprep.subr.bf16.mxu0 0
    %531 = vmatpush1.bf16.msra.mxu0 0
    %532 = vmatprep.subr.bf16.mxu0 0
    %533 = vmatpush1.bf16.msra.mxu0 0
    %534 = vmatprep.subr.bf16.mxu0 0
    %535 = vmatpush1.bf16.msra.mxu0 0
    %536 = vmatprep.subr.bf16.mxu0 0
    %537 = vmatpush1.bf16.msra.mxu0 0
    %538 = vmatprep.subr.bf16.mxu0 0
    %539 = vmatpush1.bf16.msra.mxu0 0
    %540 = vmatprep.subr.bf16.mxu0 0
    %541 = vmatpush1.bf16.msra.mxu0 0
    %542 = vmatprep.mubr.bf16.mxu0 0
    %543 = vmatmul.mubr.bf16.gmra.mrb[0].mxu0 %v223
    %v544 = vpop.f32.mrb[0].mxu0
    %v545 = vadd.f32 %v448, %v544
    %v546 = vpop.f32.mrb[0].mxu0
    %v547 = vpop.f32.mrb[0].mxu0
    %v548 = vadd.f32 %v451, %v547
    %v549 = vpop.f32.mrb[0].mxu0
    %550 = vmatprep.mubr.bf16.mxu0 0
    %551 = vmatmul.mubr.bf16.gmra.mrb[0].mxu0 %v226
    %v552 = vpop.f32.mrb[0].mxu0
    %v553 = vadd.f32 %v456, %v552
    %v554 = vpop.f32.mrb[0].mxu0
    %v555 = vpop.f32.mrb[0].mxu0
    %v556 = vadd.f32 %v459, %v555
    %v557 = vpop.f32.mrb[0].mxu0
    %558 = vmatprep.mubr.bf16.mxu0 0
    %559 = vmatmul.mubr.bf16.gmra.mrb[0].mxu0 %v229
    %v560 = vpop.f32.mrb[0].mxu0
    %v561 = vadd.f32 %v464, %v560
    %v562 = vpop.f32.mrb[0].mxu0
    %v563 = vpop.f32.mrb[0].mxu0
    %v564 = vadd.f32 %v467, %v563
    %v565 = vpop.f32.mrb[0].mxu0
    %566 = vmatprep.mubr.bf16.mxu0 0
    %567 = vmatmul.mubr.bf16.gmra.mrb[0].mxu0 %v232
    %v568 = vpop.f32.mrb[0].mxu0
    %v569 = vadd.f32 %v472, %v568
    %v570 = vpop.f32.mrb[0].mxu0
    %v571 = vpop.f32.mrb[0].mxu0
    %v572 = vadd.f32 %v475, %v571
    %v573 = vpop.f32.mrb[0].mxu0
    %574 = vmatprep.mubr.bf16.mxu0 0
    %575 = vmatmul.mubr.bf16.gmra.mrb[0].mxu0 %v235
    %v576 = vpop.f32.mrb[0].mxu0
    %v577 = vadd.f32 %v480, %v576
    %v578 = vpop.f32.mrb[0].mxu0
    %v579 = vpop.f32.mrb[0].mxu0
    %v580 = vadd.f32 %v483, %v579
    %v581 = vpop.f32.mrb[0].mxu0
    %582 = vmatprep.mubr.bf16.mxu0 0
    %583 = vmatmul.mubr.bf16.gmra.mrb[0].mxu0 %v238
    %v584 = vpop.f32.mrb[0].mxu0
    %v585 = vadd.f32 %v488, %v584
    %v586 = vpop.f32.mrb[0].mxu0
    %v587 = vpop.f32.mrb[0].mxu0
    %v588 = vadd.f32 %v491, %v587
    %v589 = vpop.f32.mrb[0].mxu0
    %590 = vmatprep.mubr.bf16.mxu0 0
    %591 = vmatmul.mubr.bf16.gmra.mrb[0].mxu0 %v241
    %v592 = vpop.f32.mrb[0].mxu0
    %v593 = vadd.f32 %v496, %v592
    %v594 = vpop.f32.mrb[0].mxu0
    %v595 = vpop.f32.mrb[0].mxu0
    %v596 = vadd.f32 %v499, %v595
    %v597 = vpop.f32.mrb[0].mxu0
    %598 = vmatprep.mubr.bf16.mxu0 0
    %599 = vmatmul.mubr.bf16.gmra.mrb[0].mxu0 %v244
    %v600 = vpop.f32.mrb[0].mxu0
    %v601 = vadd.f32 %v504, %v600
    %v602 = vpop.f32.mrb[0].mxu0
    %v603 = vpop.f32.mrb[0].mxu0
    %v604 = vadd.f32 %v507, %v603
    %v605 = vpop.f32.mrb[0].mxu0
    %606 = vdwg.mxu0
    %v607 = vrot.slane %v22, 4
    %v608 = vrot.slane %v24, 4
    %v609 = vrot.slane %v26, 4
    %v610 = vrot.slane %v28, 4
    %v611 = vrot.slane %v30, 4
    %v612 = vrot.slane %v32, 4
    %v613 = vrot.slane %v34, 4
    %v614 = vrot.slane %v36, 4
    %v615 = vrot.slane %v38, 4
    %v616 = vrot.slane %v40, 4
    %v617 = vrot.slane %v42, 4
    %v618 = vrot.slane %v44, 4
    %v619 = vrot.slane %v46, 4
    %v620 = vrot.slane %v48, 4
    %v621 = vrot.slane %v50, 4
    %v622 = vrot.slane %v52, 4
    %v639 = vunpack.c.l.bf16 %v607
    %v640 = vunpack.c.l.bf16 %v608
    %v641 = vunpack.c.l.bf16 %v609
    %v642 = vunpack.c.l.bf16 %v610
    %v643 = vunpack.c.l.bf16 %v611
    %v644 = vunpack.c.l.bf16 %v612
    %v645 = vunpack.c.l.bf16 %v613
    %v646 = vunpack.c.l.bf16 %v614
    %v647 = vunpack.c.l.bf16 %v615
    %v648 = vunpack.c.l.bf16 %v616
    %v649 = vunpack.c.l.bf16 %v617
    %v650 = vunpack.c.l.bf16 %v618
    %v651 = vunpack.c.l.bf16 %v619
    %v652 = vunpack.c.l.bf16 %v620
    %v653 = vunpack.c.l.bf16 %v621
    %v654 = vunpack.c.l.bf16 %v622
    %v655 = vadd.f32 %v545, %v639
    %v656 = vadd.f32 %v548, %v640
    %v657 = vadd.f32 %v553, %v641
    %v658 = vadd.f32 %v556, %v642
    %v659 = vadd.f32 %v561, %v643
    %v660 = vadd.f32 %v564, %v644
    %v661 = vadd.f32 %v569, %v645
    %v662 = vadd.f32 %v572, %v646
    %v663 = vadd.f32 %v577, %v647
    %v664 = vadd.f32 %v580, %v648
    %v665 = vadd.f32 %v585, %v649
    %v666 = vadd.f32 %v588, %v650
    %v667 = vadd.f32 %v593, %v651
    %v668 = vadd.f32 %v596, %v652
    %v669 = vadd.f32 %v601, %v653
    %v670 = vadd.f32 %v604, %v654
    %v671 = vmax.f32 %v655, 0.0
    %v672 = vmax.f32 %v656, 0.0
    %v673 = vmax.f32 %v657, 0.0
    %v674 = vmax.f32 %v658, 0.0
    %v675 = vmax.f32 %v659, 0.0
    %v676 = vmax.f32 %v660, 0.0
    %v677 = vmax.f32 %v661, 0.0
    %v678 = vmax.f32 %v662, 0.0
    %v679 = vmax.f32 %v663, 0.0
    %v680 = vmax.f32 %v664, 0.0
    %v681 = vmax.f32 %v665, 0.0
    %v682 = vmax.f32 %v666, 0.0
    %v683 = vmax.f32 %v667, 0.0
    %v684 = vmax.f32 %v668, 0.0
    %v685 = vmax.f32 %v669, 0.0
    %v686 = vmax.f32 %v670, 0.0
    %v687 = vld [vmem:[%s4 + $0x3] sm:$0x1]
    %v688 = vld [vmem:[%s4 + $0x5] sm:$0x1]
    %v689 = vpack.c.bf16 %v672, %v671
    %v690 = vpack.c.bf16 %v674, %v673
    %v691 = vpack.c.bf16 %v676, %v675
    %v692 = vpack.c.bf16 %v678, %v677
    %v693 = vpack.c.bf16 %v680, %v679
    %v694 = vpack.c.bf16 %v682, %v681
    %v695 = vpack.c.bf16 %v684, %v683
    %v696 = vpack.c.bf16 %v686, %v685
    %v697 = vld [vmem:[%s3] sm:$0xff]
    %v698 = vld [vmem:[%s3 + $0x8] sm:$0xff]
    %v699 = vld [vmem:[%s3 + $0x10] sm:$0xff]
    %v700 = vld [vmem:[%s3 + $0x18] sm:$0xff]
    %v701 = vld [vmem:[%s3 + $0x20] sm:$0xff]
    %v702 = vld [vmem:[%s3 + $0x28] sm:$0xff]
    %v703 = vld [vmem:[%s3 + $0x30] sm:$0xff]
    %v704 = vld [vmem:[%s3 + $0x38] sm:$0xff]
    %v705 = vld [vmem:[%s3 + $0x40] sm:$0xff]
    %v706 = vld [vmem:[%s3 + $0x48] sm:$0xff]
    %v707 = vld [vmem:[%s3 + $0x50] sm:$0xff]
    %v708 = vld [vmem:[%s3 + $0x58] sm:$0xff]
    %v709 = vld [vmem:[%s3 + $0x60] sm:$0xff]
    %v710 = vld [vmem:[%s3 + $0x68] sm:$0xff]
    %v711 = vld [vmem:[%s3 + $0x70] sm:$0xff]
    %v712 = vld [vmem:[%s3 + $0x78] sm:$0xff]
    %v729 = vunpack.c.l.b16 %v697
    %v730 = vunpack.c.h.b16 %v697
    %v731 = vunpack.c.l.b16 %v698
    %v732 = vunpack.c.h.b16 %v698
    %v733 = vunpack.c.l.b16 %v699
    %v734 = vunpack.c.h.b16 %v699
    %v735 = vunpack.c.l.b16 %v700
    %v736 = vunpack.c.h.b16 %v700
    %v737 = vunpack.c.l.b16 %v701
    %v738 = vunpack.c.h.b16 %v701
    %v739 = vunpack.c.l.b16 %v702
    %v740 = vunpack.c.h.b16 %v702
    %v741 = vunpack.c.l.b16 %v703
    %v742 = vunpack.c.h.b16 %v703
    %v743 = vunpack.c.l.b16 %v704
    %v744 = vunpack.c.h.b16 %v704
    %v745 = vunpack.c.l.b16 %v705
    %v746 = vunpack.c.h.b16 %v705
    %v747 = vunpack.c.l.b16 %v706
    %v748 = vunpack.c.h.b16 %v706
    %v749 = vunpack.c.l.b16 %v707
    %v750 = vunpack.c.h.b16 %v707
    %v751 = vunpack.c.l.b16 %v708
    %v752 = vunpack.c.h.b16 %v708
    %v753 = vunpack.c.l.b16 %v709
    %v754 = vunpack.c.h.b16 %v709
    %v755 = vunpack.c.l.b16 %v710
    %v756 = vunpack.c.h.b16 %v710
    %v757 = vunpack.c.l.b16 %v711
    %v758 = vunpack.c.h.b16 %v711
    %v759 = vunpack.c.l.b16 %v712
    %v760 = vunpack.c.h.b16 %v712
    %v761 = vpack.c.b16 %v731, %v729
    %v762 = vpack.c.b16 %v732, %v730
    %v763 = vpack.c.b16 %v735, %v733
    %v764 = vpack.c.b16 %v736, %v734
    %v765 = vpack.c.b16 %v739, %v737
    %v766 = vpack.c.b16 %v740, %v738
    %v767 = vpack.c.b16 %v743, %v741
    %v768 = vpack.c.b16 %v744, %v742
    %v769 = vpack.c.b16 %v747, %v745
    %v770 = vpack.c.b16 %v748, %v746
    %v771 = vpack.c.b16 %v751, %v749
    %v772 = vpack.c.b16 %v752, %v750
    %v773 = vpack.c.b16 %v755, %v753
    %v774 = vpack.c.b16 %v756, %v754
    %v775 = vpack.c.b16 %v759, %v757
    %v776 = vpack.c.b16 %v760, %v758
    %793 = vmatprep.subr.bf16.mxu0 %v762
    %794 = vmatpush1.bf16.msra.mxu0 %v761
    %795 = vmatprep.subr.bf16.mxu0 %v764
    %796 = vmatpush1.bf16.msra.mxu0 %v763
    %797 = vmatprep.subr.bf16.mxu0 %v766
    %798 = vmatpush1.bf16.msra.mxu0 %v765
    %799 = vmatprep.subr.bf16.mxu0 %v768
    %800 = vmatpush1.bf16.msra.mxu0 %v767
    %801 = vmatprep.subr.bf16.mxu0 %v770
    %802 = vmatpush1.bf16.msra.mxu0 %v769
    %803 = vmatprep.subr.bf16.mxu0 %v772
    %804 = vmatpush1.bf16.msra.mxu0 %v771
    %805 = vmatprep.subr.bf16.mxu0 %v774
    %806 = vmatpush1.bf16.msra.mxu0 %v773
    %807 = vmatprep.subr.bf16.mxu0 %v776
    %808 = vmatpush1.bf16.msra.mxu0 %v775
    %809 = vmatprep.subr.bf16.mxu0 0
    %810 = vmatpush1.bf16.msra.mxu0 0
    %811 = vmatprep.subr.bf16.mxu0 0
    %812 = vmatpush1.bf16.msra.mxu0 0
    %813 = vmatprep.subr.bf16.mxu0 0
    %814 = vmatpush1.bf16.msra.mxu0 0
    %815 = vmatprep.subr.bf16.mxu0 0
    %816 = vmatpush1.bf16.msra.mxu0 0
    %817 = vmatprep.subr.bf16.mxu0 0
    %818 = vmatpush1.bf16.msra.mxu0 0
    %819 = vmatprep.subr.bf16.mxu0 0
    %820 = vmatpush1.bf16.msra.mxu0 0
    %821 = vmatprep.subr.bf16.mxu0 0
    %822 = vmatpush1.bf16.msra.mxu0 0
    %823 = vmatprep.subr.bf16.mxu0 0
    %824 = vmatpush1.bf16.msra.mxu0 0
    %825 = vmatprep.mubr.bf16.mxu0 0
    %826 = vmatmul.mubr.bf16.gmra.mrb[0].mxu0 %v689
    %v827 = vpop.f32.mrb[0].mxu0
    %v828 = vadd.f32 0.0, %v827
    %v829 = vpop.f32.mrb[0].mxu0
    %v830 = vadd.f32 0.0, %v829
    %v831 = vpop.f32.mrb[0].mxu0
    %v832 = vadd.f32 0.0, %v831
    %v833 = vpop.f32.mrb[0].mxu0
    %v834 = vadd.f32 0.0, %v833
    %835 = vmatprep.mubr.bf16.mxu0 0
    %836 = vmatmul.mubr.bf16.gmra.mrb[0].mxu0 %v690
    %v837 = vpop.f32.mrb[0].mxu0
    %v838 = vadd.f32 0.0, %v837
    %v839 = vpop.f32.mrb[0].mxu0
    %v840 = vadd.f32 0.0, %v839
    %v841 = vpop.f32.mrb[0].mxu0
    %v842 = vadd.f32 0.0, %v841
    %v843 = vpop.f32.mrb[0].mxu0
    %v844 = vadd.f32 0.0, %v843
    %845 = vmatprep.mubr.bf16.mxu0 0
    %846 = vmatmul.mubr.bf16.gmra.mrb[0].mxu0 %v691
    %v847 = vpop.f32.mrb[0].mxu0
    %v848 = vadd.f32 0.0, %v847
    %v849 = vpop.f32.mrb[0].mxu0
    %v850 = vadd.f32 0.0, %v849
    %v851 = vpop.f32.mrb[0].mxu0
    %v852 = vadd.f32 0.0, %v851
    %v853 = vpop.f32.mrb[0].mxu0
    %v854 = vadd.f32 0.0, %v853
    %855 = vmatprep.mubr.bf16.mxu0 0
    %856 = vmatmul.mubr.bf16.gmra.mrb[0].mxu0 %v692
    %v857 = vpop.f32.mrb[0].mxu0
    %v858 = vadd.f32 0.0, %v857
    %v859 = vpop.f32.mrb[0].mxu0
    %v860 = vadd.f32 0.0, %v859
    %v861 = vpop.f32.mrb[0].mxu0
    %v862 = vadd.f32 0.0, %v861
    %v863 = vpop.f32.mrb[0].mxu0
    %v864 = vadd.f32 0.0, %v863
    %865 = vmatprep.mubr.bf16.mxu0 0
    %866 = vmatmul.mubr.bf16.gmra.mrb[0].mxu0 %v693
    %v867 = vpop.f32.mrb[0].mxu0
    %v868 = vadd.f32 0.0, %v867
    %v869 = vpop.f32.mrb[0].mxu0
    %v870 = vadd.f32 0.0, %v869
    %v871 = vpop.f32.mrb[0].mxu0
    %v872 = vadd.f32 0.0, %v871
    %v873 = vpop.f32.mrb[0].mxu0
    %v874 = vadd.f32 0.0, %v873
    %875 = vmatprep.mubr.bf16.mxu0 0
    %876 = vmatmul.mubr.bf16.gmra.mrb[0].mxu0 %v694
    %v877 = vpop.f32.mrb[0].mxu0
    %v878 = vadd.f32 0.0, %v877
    %v879 = vpop.f32.mrb[0].mxu0
    %v880 = vadd.f32 0.0, %v879
    %v881 = vpop.f32.mrb[0].mxu0
    %v882 = vadd.f32 0.0, %v881
    %v883 = vpop.f32.mrb[0].mxu0
    %v884 = vadd.f32 0.0, %v883
    %885 = vmatprep.mubr.bf16.mxu0 0
    %886 = vmatmul.mubr.bf16.gmra.mrb[0].mxu0 %v695
    %v887 = vpop.f32.mrb[0].mxu0
    %v888 = vadd.f32 0.0, %v887
    %v889 = vpop.f32.mrb[0].mxu0
    %v890 = vadd.f32 0.0, %v889
    %v891 = vpop.f32.mrb[0].mxu0
    %v892 = vadd.f32 0.0, %v891
    %v893 = vpop.f32.mrb[0].mxu0
    %v894 = vadd.f32 0.0, %v893
    %895 = vmatprep.mubr.bf16.mxu0 0
    %896 = vmatmul.mubr.bf16.gmra.mrb[0].mxu0 %v696
    %v897 = vpop.f32.mrb[0].mxu0
    %v898 = vadd.f32 0.0, %v897
    %v899 = vpop.f32.mrb[0].mxu0
    %v900 = vadd.f32 0.0, %v899
    %v901 = vpop.f32.mrb[0].mxu0
    %v902 = vadd.f32 0.0, %v901
    %v903 = vpop.f32.mrb[0].mxu0
    %v904 = vadd.f32 0.0, %v903
    %905 = vdwg.mxu0
    %906 = vmatprep.subr.mxu0 0.0
    %907 = vmatpush1.xpose.msra.mxu0 %v828
    %908 = vmatprep.subr.mxu0 0.0
    %909 = vmatpush1.xpose.msra.mxu0 %v832
    %910 = vmatprep.subr.mxu0 0.0
    %911 = vmatpush1.xpose.msra.mxu0 %v838
    %912 = vmatprep.subr.mxu0 0.0
    %913 = vmatpush1.xpose.msra.mxu0 %v842
    %914 = vmatprep.subr.mxu0 0.0
    %915 = vmatpush1.xpose.msra.mxu0 %v848
    %916 = vmatprep.subr.mxu0 0.0
    %917 = vmatpush1.xpose.msra.mxu0 %v852
    %918 = vmatprep.subr.mxu0 0.0
    %919 = vmatpush1.xpose.msra.mxu0 %v858
    %920 = vmatprep.subr.mxu0 0.0
    %921 = vmatpush1.xpose.msra.mxu0 %v862
    %922 = vmatprep.subr.mxu0 0.0
    %923 = vmatpush1.xpose.msra.mxu0 %v868
    %924 = vmatprep.subr.mxu0 0.0
    %925 = vmatpush1.xpose.msra.mxu0 %v872
    %926 = vmatprep.subr.mxu0 0.0
    %927 = vmatpush1.xpose.msra.mxu0 %v878
    %928 = vmatprep.subr.mxu0 0.0
    %929 = vmatpush1.xpose.msra.mxu0 %v882
    %930 = vmatprep.subr.mxu0 0.0
    %931 = vmatpush1.xpose.msra.mxu0 %v888
    %932 = vmatprep.subr.mxu0 0.0
    %933 = vmatpush1.xpose.msra.mxu0 %v892
    %934 = vmatprep.subr.mxu0 0.0
    %935 = vmatpush1.xpose.msra.mxu0 %v898
    %936 = vmatprep.subr.mxu0 0.0
    %937 = vmatpush1.xpose.msra.mxu0 %v902
    %938 = vmatprep.subr.mxu0 0.0
    %939 = vmatpush1.xpose.msra.mxu0 0.0
    %940 = vmatprep.subr.mxu0 0.0
    %941 = vmatpush1.xpose.msra.mxu0 0.0
    %942 = vmatprep.subr.mxu0 0.0
    %943 = vmatpush1.xpose.msra.mxu0 0.0
    %944 = vmatprep.subr.mxu0 0.0
    %945 = vmatpush1.xpose.msra.mxu0 0.0
    %946 = vmatprep.subr.mxu0 0.0
    %947 = vmatpush1.xpose.msra.mxu0 0.0
    %948 = vmatprep.subr.mxu0 0.0
    %949 = vmatpush1.xpose.msra.mxu0 0.0
    %950 = vmatprep.subr.mxu0 0.0
    %951 = vmatpush1.xpose.msra.mxu0 0.0
    %952 = vmatprep.subr.mxu0 0.0
    %953 = vmatpush1.xpose.msra.mxu0 0.0
    %954 = vmatprep.subr.mxu0 0.0
    %955 = vmatpush1.xpose.msra.mxu0 0.0
    %956 = vmatprep.subr.mxu0 0.0
    %957 = vmatpush1.xpose.msra.mxu0 0.0
    %958 = vmatprep.subr.mxu0 0.0
    %959 = vmatpush1.xpose.msra.mxu0 0.0
    %960 = vmatprep.subr.mxu0 0.0
    %961 = vmatpush1.xpose.msra.mxu0 0.0
    %962 = vmatprep.subr.mxu0 0.0
    %963 = vmatpush1.xpose.msra.mxu0 0.0
    %964 = vmatprep.subr.mxu0 0.0
    %965 = vmatpush1.xpose.msra.mxu0 0.0
    %966 = vmatprep.subr.mxu0 0.0
    %967 = vmatpush1.xpose.msra.mxu0 0.0
    %968 = vmatprep.subr.mxu0 0.0
    %969 = vmatpush1.xpose.msra.mxu0 0.0
    %970 = vmatprep.mubr.f32.mxu0 0.0
    %971 = vmatmul.mubr.f32.gmra.mrb[0].mxu0 %v688
    %v972 = vpop.f32.mrb[0].mxu0
    %v973 = vadd.f32 0.0, %v972
    %v974 = vpop.f32.mrb[0].mxu0
    %975 = vdwg.mxu0
    %977 = vset.pattern.permute.xlu0 0
    %978 = vperm.xlu0 %977, %v830
    %v979 = vpop.permute.xlu0 %978
    %982 = vset.pattern.permute.xlu0 0
    %983 = vperm.xlu0 %982, %v834
    %v984 = vpop.permute.xlu0 %983
    %987 = vset.pattern.permute.xlu0 0
    %988 = vperm.xlu0 %987, %v840
    %v989 = vpop.permute.xlu0 %988
    %992 = vset.pattern.permute.xlu0 0
    %993 = vperm.xlu0 %992, %v844
    %v994 = vpop.permute.xlu0 %993
    %997 = vset.pattern.permute.xlu0 0
    %998 = vperm.xlu0 %997, %v850
    %v999 = vpop.permute.xlu0 %998
    %1002 = vset.pattern.permute.xlu0 0
    %1003 = vperm.xlu0 %1002, %v854
    %v1004 = vpop.permute.xlu0 %1003
    %1007 = vset.pattern.permute.xlu0 0
    %1008 = vperm.xlu0 %1007, %v860
    %v1009 = vpop.permute.xlu0 %1008
    %1012 = vset.pattern.permute.xlu0 0
    %1013 = vperm.xlu0 %1012, %v864
    %v1014 = vpop.permute.xlu0 %1013
    %1017 = vset.pattern.permute.xlu0 0
    %1018 = vperm.xlu0 %1017, %v870
    %v1019 = vpop.permute.xlu0 %1018
    %1022 = vset.pattern.permute.xlu0 0
    %1023 = vperm.xlu0 %1022, %v874
    %v1024 = vpop.permute.xlu0 %1023
    %1027 = vset.pattern.permute.xlu0 0
    %1028 = vperm.xlu0 %1027, %v880
    %v1029 = vpop.permute.xlu0 %1028
    %1032 = vset.pattern.permute.xlu0 0
    %1033 = vperm.xlu0 %1032, %v884
    %v1034 = vpop.permute.xlu0 %1033
    %1037 = vset.pattern.permute.xlu0 0
    %1038 = vperm.xlu0 %1037, %v890
    %v1039 = vpop.permute.xlu0 %1038
    %1042 = vset.pattern.permute.xlu0 0
    %1043 = vperm.xlu0 %1042, %v894
    %v1044 = vpop.permute.xlu0 %1043
    %1047 = vset.pattern.permute.xlu0 0
    %1048 = vperm.xlu0 %1047, %v900
    %v1049 = vpop.permute.xlu0 %1048
    %1052 = vset.pattern.permute.xlu0 0
    %1053 = vperm.xlu0 %1052, %v904
    %v1054 = vpop.permute.xlu0 %1053
    %v1056 = vlaneseq
    %v1057 = vshrl.u32 %v1056, 7
    %v1058 = vsub.s32 0, %v1057
    %v1059 = vrot.slane %v973, %v1058
    %v1060 = vadd.f32 %v979, %v1059
    %v1061 = vadd.f32 %v984, %v1059
    %v1062 = vadd.f32 %v989, %v1059
    %v1063 = vadd.f32 %v994, %v1059
    %v1064 = vadd.f32 %v999, %v1059
    %v1065 = vadd.f32 %v1004, %v1059
    %v1066 = vadd.f32 %v1009, %v1059
    %v1067 = vadd.f32 %v1014, %v1059
    %v1068 = vadd.f32 %v1019, %v1059
    %v1069 = vadd.f32 %v1024, %v1059
    %v1070 = vadd.f32 %v1029, %v1059
    %v1071 = vadd.f32 %v1034, %v1059
    %v1072 = vadd.f32 %v1039, %v1059
    %v1073 = vadd.f32 %v1044, %v1059
    %v1074 = vadd.f32 %v1049, %v1059
    %v1075 = vadd.f32 %v1054, %v1059
    %vm1076 = vcmp.ge.f32.partialorder %v1060, 0.0
    %vm1077 = vcmp.ge.f32.partialorder %v1061, 0.0
    %vm1078 = vcmp.ge.f32.partialorder %v1062, 0.0
    %vm1079 = vcmp.ge.f32.partialorder %v1063, 0.0
    %vm1080 = vcmp.ge.f32.partialorder %v1064, 0.0
    %vm1081 = vcmp.ge.f32.partialorder %v1065, 0.0
    %vm1082 = vcmp.ge.f32.partialorder %v1066, 0.0
    %vm1083 = vcmp.ge.f32.partialorder %v1067, 0.0
    %vm1084 = vcmp.ge.f32.partialorder %v1068, 0.0
    %vm1085 = vcmp.ge.f32.partialorder %v1069, 0.0
    %vm1086 = vcmp.ge.f32.partialorder %v1070, 0.0
    %vm1087 = vcmp.ge.f32.partialorder %v1071, 0.0
    %vm1088 = vcmp.ge.f32.partialorder %v1072, 0.0
    %vm1089 = vcmp.ge.f32.partialorder %v1073, 0.0
    %vm1090 = vcmp.ge.f32.partialorder %v1074, 0.0
    %vm1091 = vcmp.ge.f32.partialorder %v1075, 0.0
    %v1092 = vmul.f32 %v1060, 0.2
    %v1093 = vmul.f32 %v1061, 0.2
    %v1094 = vmul.f32 %v1062, 0.2
    %v1095 = vmul.f32 %v1063, 0.2
    %v1096 = vmul.f32 %v1064, 0.2
    %v1097 = vmul.f32 %v1065, 0.2
    %v1098 = vmul.f32 %v1066, 0.2
    %v1099 = vmul.f32 %v1067, 0.2
    %v1100 = vmul.f32 %v1068, 0.2
    %v1101 = vmul.f32 %v1069, 0.2
    %v1102 = vmul.f32 %v1070, 0.2
    %v1103 = vmul.f32 %v1071, 0.2
    %v1104 = vmul.f32 %v1072, 0.2
    %v1105 = vmul.f32 %v1073, 0.2
    %v1106 = vmul.f32 %v1074, 0.2
    %v1107 = vmul.f32 %v1075, 0.2
    %v1108 = vsel %vm1076, %v1060, %v1092
    %v1109 = vsel %vm1077, %v1061, %v1093
    %v1110 = vsel %vm1078, %v1062, %v1094
    %v1111 = vsel %vm1079, %v1063, %v1095
    %v1112 = vsel %vm1080, %v1064, %v1096
    %v1113 = vsel %vm1081, %v1065, %v1097
    %v1114 = vsel %vm1082, %v1066, %v1098
    %v1115 = vsel %vm1083, %v1067, %v1099
    %v1116 = vsel %vm1084, %v1068, %v1100
    %v1117 = vsel %vm1085, %v1069, %v1101
    %v1118 = vsel %vm1086, %v1070, %v1102
    %v1119 = vsel %vm1087, %v1071, %v1103
    %v1120 = vsel %vm1088, %v1072, %v1104
    %v1121 = vsel %vm1089, %v1073, %v1105
    %v1122 = vsel %vm1090, %v1074, %v1106
    %v1123 = vsel %vm1091, %v1075, %v1107
    %v1124 = vadd.f32 %v1108, %v121
    %v1125 = vadd.f32 %v1109, %v122
    %v1126 = vadd.f32 %v1110, %v123
    %v1127 = vadd.f32 %v1111, %v124
    %v1128 = vadd.f32 %v1112, %v125
    %v1129 = vadd.f32 %v1113, %v126
    %v1130 = vadd.f32 %v1114, %v127
    %v1131 = vadd.f32 %v1115, %v128
    %v1132 = vadd.f32 %v1116, %v129
    %v1133 = vadd.f32 %v1117, %v130
    %v1134 = vadd.f32 %v1118, %v131
    %v1135 = vadd.f32 %v1119, %v132
    %v1136 = vadd.f32 %v1120, %v133
    %v1137 = vadd.f32 %v1121, %v134
    %v1138 = vadd.f32 %v1122, %v135
    %v1139 = vadd.f32 %v1123, %v136
    %1140 = vmax.xlane.f32.xlu0 %v1124
    %v1141 = vpop.xlane.xlu0 %1140
    %1142 = vmax.xlane.f32.xlu0 %v1125
    %v1143 = vpop.xlane.xlu0 %1142
    %1144 = vmax.xlane.f32.xlu0 %v1126
    %v1145 = vpop.xlane.xlu0 %1144
    %1146 = vmax.xlane.f32.xlu0 %v1127
    %v1147 = vpop.xlane.xlu0 %1146
    %1148 = vmax.xlane.f32.xlu0 %v1128
    %v1149 = vpop.xlane.xlu0 %1148
    %1150 = vmax.xlane.f32.xlu0 %v1129
    %v1151 = vpop.xlane.xlu0 %1150
    %1152 = vmax.xlane.f32.xlu0 %v1130
    %v1153 = vpop.xlane.xlu0 %1152
    %1154 = vmax.xlane.f32.xlu0 %v1131
    %v1155 = vpop.xlane.xlu0 %1154
    %1156 = vmax.xlane.f32.xlu0 %v1132
    %v1157 = vpop.xlane.xlu0 %1156
    %1158 = vmax.xlane.f32.xlu0 %v1133
    %v1159 = vpop.xlane.xlu0 %1158
    %1160 = vmax.xlane.f32.xlu0 %v1134
    %v1161 = vpop.xlane.xlu0 %1160
    %1162 = vmax.xlane.f32.xlu0 %v1135
    %v1163 = vpop.xlane.xlu0 %1162
    %1164 = vmax.xlane.f32.xlu0 %v1136
    %v1165 = vpop.xlane.xlu0 %1164
    %1166 = vmax.xlane.f32.xlu0 %v1137
    %v1167 = vpop.xlane.xlu0 %1166
    %1168 = vmax.xlane.f32.xlu0 %v1138
    %v1169 = vpop.xlane.xlu0 %1168
    %1170 = vmax.xlane.f32.xlu0 %v1139
    %v1171 = vpop.xlane.xlu0 %1170
    %v1172 = vsub.f32 %v1124, %v1141
    %v1173 = vsub.f32 %v1125, %v1143
    %v1174 = vsub.f32 %v1126, %v1145
    %v1175 = vsub.f32 %v1127, %v1147
    %v1176 = vsub.f32 %v1128, %v1149
    %v1177 = vsub.f32 %v1129, %v1151
    %v1178 = vsub.f32 %v1130, %v1153
    %v1179 = vsub.f32 %v1131, %v1155
    %v1180 = vsub.f32 %v1132, %v1157
    %v1181 = vsub.f32 %v1133, %v1159
    %v1182 = vsub.f32 %v1134, %v1161
    %v1183 = vsub.f32 %v1135, %v1163
    %v1184 = vsub.f32 %v1136, %v1165
    %v1185 = vsub.f32 %v1137, %v1167
    %v1186 = vsub.f32 %v1138, %v1169
    %v1187 = vsub.f32 %v1139, %v1171
    %v1188 = vmul.f32 %v1172, 1.442695
    %v1189 = vpow.pop %v1188
    %v1190 = vmul.f32 %v1173, 1.442695
    %v1191 = vpow.pop %v1190
    %v1192 = vmul.f32 %v1174, 1.442695
    %v1193 = vpow.pop %v1192
    %v1194 = vmul.f32 %v1175, 1.442695
    %v1195 = vpow.pop %v1194
    %v1196 = vmul.f32 %v1176, 1.442695
    %v1197 = vpow.pop %v1196
    %v1198 = vmul.f32 %v1177, 1.442695
    %v1199 = vpow.pop %v1198
    %v1200 = vmul.f32 %v1178, 1.442695
    %v1201 = vpow.pop %v1200
    %v1202 = vmul.f32 %v1179, 1.442695
    %v1203 = vpow.pop %v1202
    %v1204 = vmul.f32 %v1180, 1.442695
    %v1205 = vpow.pop %v1204
    %v1206 = vmul.f32 %v1181, 1.442695
    %v1207 = vpow.pop %v1206
    %v1208 = vmul.f32 %v1182, 1.442695
    %v1209 = vpow.pop %v1208
    %v1210 = vmul.f32 %v1183, 1.442695
    %v1211 = vpow.pop %v1210
    %v1212 = vmul.f32 %v1184, 1.442695
    %v1213 = vpow.pop %v1212
    %v1214 = vmul.f32 %v1185, 1.442695
    %v1215 = vpow.pop %v1214
    %v1216 = vmul.f32 %v1186, 1.442695
    %v1217 = vpow.pop %v1216
    %v1218 = vmul.f32 %v1187, 1.442695
    %v1219 = vpow.pop %v1218
    %1220 = vadd.xlane.f32.xlu0 %v1189
    %v1221 = vpop.xlane.xlu0 %1220
    %1222 = vadd.xlane.f32.xlu0 %v1191
    %v1223 = vpop.xlane.xlu0 %1222
    %1224 = vadd.xlane.f32.xlu0 %v1193
    %v1225 = vpop.xlane.xlu0 %1224
    %1226 = vadd.xlane.f32.xlu0 %v1195
    %v1227 = vpop.xlane.xlu0 %1226
    %1228 = vadd.xlane.f32.xlu0 %v1197
    %v1229 = vpop.xlane.xlu0 %1228
    %1230 = vadd.xlane.f32.xlu0 %v1199
    %v1231 = vpop.xlane.xlu0 %1230
    %1232 = vadd.xlane.f32.xlu0 %v1201
    %v1233 = vpop.xlane.xlu0 %1232
    %1234 = vadd.xlane.f32.xlu0 %v1203
    %v1235 = vpop.xlane.xlu0 %1234
    %1236 = vadd.xlane.f32.xlu0 %v1205
    %v1237 = vpop.xlane.xlu0 %1236
    %1238 = vadd.xlane.f32.xlu0 %v1207
    %v1239 = vpop.xlane.xlu0 %1238
    %1240 = vadd.xlane.f32.xlu0 %v1209
    %v1241 = vpop.xlane.xlu0 %1240
    %1242 = vadd.xlane.f32.xlu0 %v1211
    %v1243 = vpop.xlane.xlu0 %1242
    %1244 = vadd.xlane.f32.xlu0 %v1213
    %v1245 = vpop.xlane.xlu0 %1244
    %1246 = vadd.xlane.f32.xlu0 %v1215
    %v1247 = vpop.xlane.xlu0 %1246
    %1248 = vadd.xlane.f32.xlu0 %v1217
    %v1249 = vpop.xlane.xlu0 %1248
    %1250 = vadd.xlane.f32.xlu0 %v1219
    %v1251 = vpop.xlane.xlu0 %1250
    %v1252 = vrcp.pop %v1221
    %v1253 = vrcp.pop %v1223
    %v1254 = vrcp.pop %v1225
    %v1255 = vrcp.pop %v1227
    %v1256 = vrcp.pop %v1229
    %v1257 = vrcp.pop %v1231
    %v1258 = vrcp.pop %v1233
    %v1259 = vrcp.pop %v1235
    %v1260 = vrcp.pop %v1237
    %v1261 = vrcp.pop %v1239
    %v1262 = vrcp.pop %v1241
    %v1263 = vrcp.pop %v1243
    %v1264 = vrcp.pop %v1245
    %v1265 = vrcp.pop %v1247
    %v1266 = vrcp.pop %v1249
    %v1267 = vrcp.pop %v1251
    %v1268 = vmul.f32 %v1221, %v1252
    %v1269 = vmul.f32 %v1223, %v1253
    %v1270 = vmul.f32 %v1225, %v1254
    %v1271 = vmul.f32 %v1227, %v1255
    %v1272 = vmul.f32 %v1229, %v1256
    %v1273 = vmul.f32 %v1231, %v1257
    %v1274 = vmul.f32 %v1233, %v1258
    %v1275 = vmul.f32 %v1235, %v1259
    %v1276 = vmul.f32 %v1237, %v1260
    %v1277 = vmul.f32 %v1239, %v1261
    %v1278 = vmul.f32 %v1241, %v1262
    %v1279 = vmul.f32 %v1243, %v1263
    %v1280 = vmul.f32 %v1245, %v1264
    %v1281 = vmul.f32 %v1247, %v1265
    %v1282 = vmul.f32 %v1249, %v1266
    %v1283 = vmul.f32 %v1251, %v1267
    %v1284 = vsub.f32 2.0, %v1268
    %v1285 = vsub.f32 2.0, %v1269
    %v1286 = vsub.f32 2.0, %v1270
    %v1287 = vsub.f32 2.0, %v1271
    %v1288 = vsub.f32 2.0, %v1272
    %v1289 = vsub.f32 2.0, %v1273
    %v1290 = vsub.f32 2.0, %v1274
    %v1291 = vsub.f32 2.0, %v1275
    %v1292 = vsub.f32 2.0, %v1276
    %v1293 = vsub.f32 2.0, %v1277
    %v1294 = vsub.f32 2.0, %v1278
    %v1295 = vsub.f32 2.0, %v1279
    %v1296 = vsub.f32 2.0, %v1280
    %v1297 = vsub.f32 2.0, %v1281
    %v1298 = vsub.f32 2.0, %v1282
    %v1299 = vsub.f32 2.0, %v1283
    %v1300 = vmul.f32 %v1252, %v1284
    %v1301 = vmul.f32 %v1253, %v1285
    %v1302 = vmul.f32 %v1254, %v1286
    %v1303 = vmul.f32 %v1255, %v1287
    %v1304 = vmul.f32 %v1256, %v1288
    %v1305 = vmul.f32 %v1257, %v1289
    %v1306 = vmul.f32 %v1258, %v1290
    %v1307 = vmul.f32 %v1259, %v1291
    %v1308 = vmul.f32 %v1260, %v1292
    %v1309 = vmul.f32 %v1261, %v1293
    %v1310 = vmul.f32 %v1262, %v1294
    %v1311 = vmul.f32 %v1263, %v1295
    %v1312 = vmul.f32 %v1264, %v1296
    %v1313 = vmul.f32 %v1265, %v1297
    %v1314 = vmul.f32 %v1266, %v1298
    %v1315 = vmul.f32 %v1267, %v1299
    %v1316 = vpack.c.bf16 %v1191, %v1189
    %v1317 = vpack.c.bf16 %v1195, %v1193
    %v1318 = vpack.c.bf16 %v1199, %v1197
    %v1319 = vpack.c.bf16 %v1203, %v1201
    %v1320 = vpack.c.bf16 %v1207, %v1205
    %v1321 = vpack.c.bf16 %v1211, %v1209
    %v1322 = vpack.c.bf16 %v1215, %v1213
    %v1323 = vpack.c.bf16 %v1219, %v1217
    %v1324 = vpack.c.bf16 %v832, %v828
    %v1325 = vpack.c.bf16 %v842, %v838
    %v1326 = vpack.c.bf16 %v852, %v848
    %v1327 = vpack.c.bf16 %v862, %v858
    %v1328 = vpack.c.bf16 %v872, %v868
    %v1329 = vpack.c.bf16 %v882, %v878
    %v1330 = vpack.c.bf16 %v892, %v888
    %v1331 = vpack.c.bf16 %v902, %v898
    %1332 = vmatprep.subr.bf16.mxu0 0
    %1333 = vmatpush1.bf16.msra.mxu0 %v1324
    %1334 = vmatprep.subr.bf16.mxu0 0
    %1335 = vmatpush1.bf16.msra.mxu0 %v1325
    %1336 = vmatprep.subr.bf16.mxu0 0
    %1337 = vmatpush1.bf16.msra.mxu0 %v1326
    %1338 = vmatprep.subr.bf16.mxu0 0
    %1339 = vmatpush1.bf16.msra.mxu0 %v1327
    %1340 = vmatprep.subr.bf16.mxu0 0
    %1341 = vmatpush1.bf16.msra.mxu0 %v1328
    %1342 = vmatprep.subr.bf16.mxu0 0
    %1343 = vmatpush1.bf16.msra.mxu0 %v1329
    %1344 = vmatprep.subr.bf16.mxu0 0
    %1345 = vmatpush1.bf16.msra.mxu0 %v1330
    %1346 = vmatprep.subr.bf16.mxu0 0
    %1347 = vmatpush1.bf16.msra.mxu0 %v1331
    %1348 = vmatprep.subr.bf16.mxu0 0
    %1349 = vmatpush1.bf16.msra.mxu0 0
    %1350 = vmatprep.subr.bf16.mxu0 0
    %1351 = vmatpush1.bf16.msra.mxu0 0
    %1352 = vmatprep.subr.bf16.mxu0 0
    %1353 = vmatpush1.bf16.msra.mxu0 0
    %1354 = vmatprep.subr.bf16.mxu0 0
    %1355 = vmatpush1.bf16.msra.mxu0 0
    %1356 = vmatprep.subr.bf16.mxu0 0
    %1357 = vmatpush1.bf16.msra.mxu0 0
    %1358 = vmatprep.subr.bf16.mxu0 0
    %1359 = vmatpush1.bf16.msra.mxu0 0
    %1360 = vmatprep.subr.bf16.mxu0 0
    %1361 = vmatpush1.bf16.msra.mxu0 0
    %1362 = vmatprep.subr.bf16.mxu0 0
    %1363 = vmatpush1.bf16.msra.mxu0 0
    %1364 = vmatprep.mubr.bf16.mxu0 0
    %1365 = vmatmul.mubr.bf16.gmra.mrb[0].mxu0 %v1316
    %v1366 = vpop.f32.mrb[0].mxu0
    %v1367 = vadd.f32 0.0, %v1366
    %v1368 = vpop.f32.mrb[0].mxu0
    %v1369 = vpop.f32.mrb[0].mxu0
    %v1370 = vadd.f32 0.0, %v1369
    %v1371 = vpop.f32.mrb[0].mxu0
    %1372 = vmatprep.mubr.bf16.mxu0 0
    %1373 = vmatmul.mubr.bf16.gmra.mrb[0].mxu0 %v1317
    %v1374 = vpop.f32.mrb[0].mxu0
    %v1375 = vadd.f32 0.0, %v1374
    %v1376 = vpop.f32.mrb[0].mxu0
    %v1377 = vpop.f32.mrb[0].mxu0
    %v1378 = vadd.f32 0.0, %v1377
    %v1379 = vpop.f32.mrb[0].mxu0
    %1380 = vmatprep.mubr.bf16.mxu0 0
    %1381 = vmatmul.mubr.bf16.gmra.mrb[0].mxu0 %v1318
    %v1382 = vpop.f32.mrb[0].mxu0
    %v1383 = vadd.f32 0.0, %v1382
    %v1384 = vpop.f32.mrb[0].mxu0
    %v1385 = vpop.f32.mrb[0].mxu0
    %v1386 = vadd.f32 0.0, %v1385
    %v1387 = vpop.f32.mrb[0].mxu0
    %1388 = vmatprep.mubr.bf16.mxu0 0
    %1389 = vmatmul.mubr.bf16.gmra.mrb[0].mxu0 %v1319
    %v1390 = vpop.f32.mrb[0].mxu0
    %v1391 = vadd.f32 0.0, %v1390
    %v1392 = vpop.f32.mrb[0].mxu0
    %v1393 = vpop.f32.mrb[0].mxu0
    %v1394 = vadd.f32 0.0, %v1393
    %v1395 = vpop.f32.mrb[0].mxu0
    %1396 = vmatprep.mubr.bf16.mxu0 0
    %1397 = vmatmul.mubr.bf16.gmra.mrb[0].mxu0 %v1320
    %v1398 = vpop.f32.mrb[0].mxu0
    %v1399 = vadd.f32 0.0, %v1398
    %v1400 = vpop.f32.mrb[0].mxu0
    %v1401 = vpop.f32.mrb[0].mxu0
    %v1402 = vadd.f32 0.0, %v1401
    %v1403 = vpop.f32.mrb[0].mxu0
    %1404 = vmatprep.mubr.bf16.mxu0 0
    %1405 = vmatmul.mubr.bf16.gmra.mrb[0].mxu0 %v1321
    %v1406 = vpop.f32.mrb[0].mxu0
    %v1407 = vadd.f32 0.0, %v1406
    %v1408 = vpop.f32.mrb[0].mxu0
    %v1409 = vpop.f32.mrb[0].mxu0
    %v1410 = vadd.f32 0.0, %v1409
    %v1411 = vpop.f32.mrb[0].mxu0
    %1412 = vmatprep.mubr.bf16.mxu0 0
    %1413 = vmatmul.mubr.bf16.gmra.mrb[0].mxu0 %v1322
    %v1414 = vpop.f32.mrb[0].mxu0
    %v1415 = vadd.f32 0.0, %v1414
    %v1416 = vpop.f32.mrb[0].mxu0
    %v1417 = vpop.f32.mrb[0].mxu0
    %v1418 = vadd.f32 0.0, %v1417
    %v1419 = vpop.f32.mrb[0].mxu0
    %1420 = vmatprep.mubr.bf16.mxu0 0
    %1421 = vmatmul.mubr.bf16.gmra.mrb[0].mxu0 %v1323
    %v1422 = vpop.f32.mrb[0].mxu0
    %v1423 = vadd.f32 0.0, %v1422
    %v1424 = vpop.f32.mrb[0].mxu0
    %v1425 = vpop.f32.mrb[0].mxu0
    %v1426 = vadd.f32 0.0, %v1425
    %v1427 = vpop.f32.mrb[0].mxu0
    %1428 = vdwg.mxu0
    %v1429 = vmul.f32 %v1367, %v1300
    %v1430 = vmul.f32 %v1370, %v1301
    %v1431 = vmul.f32 %v1375, %v1302
    %v1432 = vmul.f32 %v1378, %v1303
    %v1433 = vmul.f32 %v1383, %v1304
    %v1434 = vmul.f32 %v1386, %v1305
    %v1435 = vmul.f32 %v1391, %v1306
    %v1436 = vmul.f32 %v1394, %v1307
    %v1437 = vmul.f32 %v1399, %v1308
    %v1438 = vmul.f32 %v1402, %v1309
    %v1439 = vmul.f32 %v1407, %v1310
    %v1440 = vmul.f32 %v1410, %v1311
    %v1441 = vmul.f32 %v1415, %v1312
    %v1442 = vmul.f32 %v1418, %v1313
    %v1443 = vmul.f32 %v1423, %v1314
    %v1444 = vmul.f32 %v1426, %v1315
    %v1445 = vlaneseq
    %v1446 = vshrl.u32 %v1445, 7
    %v1447 = vsub.s32 0, %v1446
    %v1448 = vrot.slane %v687, %v1447
    %v1449 = vadd.f32 %v1429, %v1448
    %v1450 = vadd.f32 %v1430, %v1448
    %v1451 = vadd.f32 %v1431, %v1448
    %v1452 = vadd.f32 %v1432, %v1448
    %v1453 = vadd.f32 %v1433, %v1448
    %v1454 = vadd.f32 %v1434, %v1448
    %v1455 = vadd.f32 %v1435, %v1448
    %v1456 = vadd.f32 %v1436, %v1448
    %v1457 = vadd.f32 %v1437, %v1448
    %v1458 = vadd.f32 %v1438, %v1448
    %v1459 = vadd.f32 %v1439, %v1448
    %v1460 = vadd.f32 %v1440, %v1448
    %v1461 = vadd.f32 %v1441, %v1448
    %v1462 = vadd.f32 %v1442, %v1448
    %v1463 = vadd.f32 %v1443, %v1448
    %v1464 = vadd.f32 %v1444, %v1448
    %v1465 = vmax.f32 %v1449, 0.0
    %v1466 = vmax.f32 %v1450, 0.0
    %v1467 = vmax.f32 %v1451, 0.0
    %v1468 = vmax.f32 %v1452, 0.0
    %v1469 = vmax.f32 %v1453, 0.0
    %v1470 = vmax.f32 %v1454, 0.0
    %v1471 = vmax.f32 %v1455, 0.0
    %v1472 = vmax.f32 %v1456, 0.0
    %v1473 = vmax.f32 %v1457, 0.0
    %v1474 = vmax.f32 %v1458, 0.0
    %v1475 = vmax.f32 %v1459, 0.0
    %v1476 = vmax.f32 %v1460, 0.0
    %v1477 = vmax.f32 %v1461, 0.0
    %v1478 = vmax.f32 %v1462, 0.0
    %v1479 = vmax.f32 %v1463, 0.0
    %v1480 = vmax.f32 %v1464, 0.0
    %v1481 = vld [vmem:[%s4 + $0x4] sm:$0x1]
    %v1482 = vld [vmem:[%s4 + $0x6] sm:$0x1]
    %v1483 = vpack.c.bf16 %v1466, %v1465
    %v1484 = vpack.c.bf16 %v1468, %v1467
    %v1485 = vpack.c.bf16 %v1470, %v1469
    %v1486 = vpack.c.bf16 %v1472, %v1471
    %v1487 = vpack.c.bf16 %v1474, %v1473
    %v1488 = vpack.c.bf16 %v1476, %v1475
    %v1489 = vpack.c.bf16 %v1478, %v1477
    %v1490 = vpack.c.bf16 %v1480, %v1479
    %s1491 = scalar_lea.vmem %s3, 128
    %v1492 = vld [vmem:[%s1491] sm:$0xff]
    %v1493 = vld [vmem:[%s1491 + $0x8] sm:$0xff]
    %v1494 = vld [vmem:[%s1491 + $0x10] sm:$0xff]
    %v1495 = vld [vmem:[%s1491 + $0x18] sm:$0xff]
    %v1496 = vld [vmem:[%s1491 + $0x20] sm:$0xff]
    %v1497 = vld [vmem:[%s1491 + $0x28] sm:$0xff]
    %v1498 = vld [vmem:[%s1491 + $0x30] sm:$0xff]
    %v1499 = vld [vmem:[%s1491 + $0x38] sm:$0xff]
    %v1500 = vld [vmem:[%s1491 + $0x40] sm:$0xff]
    %v1501 = vld [vmem:[%s1491 + $0x48] sm:$0xff]
    %v1502 = vld [vmem:[%s1491 + $0x50] sm:$0xff]
    %v1503 = vld [vmem:[%s1491 + $0x58] sm:$0xff]
    %v1504 = vld [vmem:[%s1491 + $0x60] sm:$0xff]
    %v1505 = vld [vmem:[%s1491 + $0x68] sm:$0xff]
    %v1506 = vld [vmem:[%s1491 + $0x70] sm:$0xff]
    %v1507 = vld [vmem:[%s1491 + $0x78] sm:$0xff]
    %v1524 = vunpack.c.l.b16 %v1492
    %v1525 = vunpack.c.h.b16 %v1492
    %v1526 = vunpack.c.l.b16 %v1493
    %v1527 = vunpack.c.h.b16 %v1493
    %v1528 = vunpack.c.l.b16 %v1494
    %v1529 = vunpack.c.h.b16 %v1494
    %v1530 = vunpack.c.l.b16 %v1495
    %v1531 = vunpack.c.h.b16 %v1495
    %v1532 = vunpack.c.l.b16 %v1496
    %v1533 = vunpack.c.h.b16 %v1496
    %v1534 = vunpack.c.l.b16 %v1497
    %v1535 = vunpack.c.h.b16 %v1497
    %v1536 = vunpack.c.l.b16 %v1498
    %v1537 = vunpack.c.h.b16 %v1498
    %v1538 = vunpack.c.l.b16 %v1499
    %v1539 = vunpack.c.h.b16 %v1499
    %v1540 = vunpack.c.l.b16 %v1500
    %v1541 = vunpack.c.h.b16 %v1500
    %v1542 = vunpack.c.l.b16 %v1501
    %v1543 = vunpack.c.h.b16 %v1501
    %v1544 = vunpack.c.l.b16 %v1502
    %v1545 = vunpack.c.h.b16 %v1502
    %v1546 = vunpack.c.l.b16 %v1503
    %v1547 = vunpack.c.h.b16 %v1503
    %v1548 = vunpack.c.l.b16 %v1504
    %v1549 = vunpack.c.h.b16 %v1504
    %v1550 = vunpack.c.l.b16 %v1505
    %v1551 = vunpack.c.h.b16 %v1505
    %v1552 = vunpack.c.l.b16 %v1506
    %v1553 = vunpack.c.h.b16 %v1506
    %v1554 = vunpack.c.l.b16 %v1507
    %v1555 = vunpack.c.h.b16 %v1507
    %v1556 = vpack.c.b16 %v1526, %v1524
    %v1557 = vpack.c.b16 %v1527, %v1525
    %v1558 = vpack.c.b16 %v1530, %v1528
    %v1559 = vpack.c.b16 %v1531, %v1529
    %v1560 = vpack.c.b16 %v1534, %v1532
    %v1561 = vpack.c.b16 %v1535, %v1533
    %v1562 = vpack.c.b16 %v1538, %v1536
    %v1563 = vpack.c.b16 %v1539, %v1537
    %v1564 = vpack.c.b16 %v1542, %v1540
    %v1565 = vpack.c.b16 %v1543, %v1541
    %v1566 = vpack.c.b16 %v1546, %v1544
    %v1567 = vpack.c.b16 %v1547, %v1545
    %v1568 = vpack.c.b16 %v1550, %v1548
    %v1569 = vpack.c.b16 %v1551, %v1549
    %v1570 = vpack.c.b16 %v1554, %v1552
    %v1571 = vpack.c.b16 %v1555, %v1553
    %1588 = vmatprep.subr.bf16.mxu0 %v1557
    %1589 = vmatpush1.bf16.msra.mxu0 %v1556
    %1590 = vmatprep.subr.bf16.mxu0 %v1559
    %1591 = vmatpush1.bf16.msra.mxu0 %v1558
    %1592 = vmatprep.subr.bf16.mxu0 %v1561
    %1593 = vmatpush1.bf16.msra.mxu0 %v1560
    %1594 = vmatprep.subr.bf16.mxu0 %v1563
    %1595 = vmatpush1.bf16.msra.mxu0 %v1562
    %1596 = vmatprep.subr.bf16.mxu0 %v1565
    %1597 = vmatpush1.bf16.msra.mxu0 %v1564
    %1598 = vmatprep.subr.bf16.mxu0 %v1567
    %1599 = vmatpush1.bf16.msra.mxu0 %v1566
    %1600 = vmatprep.subr.bf16.mxu0 %v1569
    %1601 = vmatpush1.bf16.msra.mxu0 %v1568
    %1602 = vmatprep.subr.bf16.mxu0 %v1571
    %1603 = vmatpush1.bf16.msra.mxu0 %v1570
    %1604 = vmatprep.subr.bf16.mxu0 0
    %1605 = vmatpush1.bf16.msra.mxu0 0
    %1606 = vmatprep.subr.bf16.mxu0 0
    %1607 = vmatpush1.bf16.msra.mxu0 0
    %1608 = vmatprep.subr.bf16.mxu0 0
    %1609 = vmatpush1.bf16.msra.mxu0 0
    %1610 = vmatprep.subr.bf16.mxu0 0
    %1611 = vmatpush1.bf16.msra.mxu0 0
    %1612 = vmatprep.subr.bf16.mxu0 0
    %1613 = vmatpush1.bf16.msra.mxu0 0
    %1614 = vmatprep.subr.bf16.mxu0 0
    %1615 = vmatpush1.bf16.msra.mxu0 0
    %1616 = vmatprep.subr.bf16.mxu0 0
    %1617 = vmatpush1.bf16.msra.mxu0 0
    %1618 = vmatprep.subr.bf16.mxu0 0
    %1619 = vmatpush1.bf16.msra.mxu0 0
    %1620 = vmatprep.mubr.bf16.mxu0 0
    %1621 = vmatmul.mubr.bf16.gmra.mrb[0].mxu0 %v1483
    %v1622 = vpop.f32.mrb[0].mxu0
    %v1623 = vadd.f32 0.0, %v1622
    %v1624 = vpop.f32.mrb[0].mxu0
    %v1625 = vadd.f32 0.0, %v1624
    %v1626 = vpop.f32.mrb[0].mxu0
    %v1627 = vadd.f32 0.0, %v1626
    %v1628 = vpop.f32.mrb[0].mxu0
    %v1629 = vadd.f32 0.0, %v1628
    %1630 = vmatprep.mubr.bf16.mxu0 0
    %1631 = vmatmul.mubr.bf16.gmra.mrb[0].mxu0 %v1484
    %v1632 = vpop.f32.mrb[0].mxu0
    %v1633 = vadd.f32 0.0, %v1632
    %v1634 = vpop.f32.mrb[0].mxu0
    %v1635 = vadd.f32 0.0, %v1634
    %v1636 = vpop.f32.mrb[0].mxu0
    %v1637 = vadd.f32 0.0, %v1636
    %v1638 = vpop.f32.mrb[0].mxu0
    %v1639 = vadd.f32 0.0, %v1638
    %1640 = vmatprep.mubr.bf16.mxu0 0
    %1641 = vmatmul.mubr.bf16.gmra.mrb[0].mxu0 %v1485
    %v1642 = vpop.f32.mrb[0].mxu0
    %v1643 = vadd.f32 0.0, %v1642
    %v1644 = vpop.f32.mrb[0].mxu0
    %v1645 = vadd.f32 0.0, %v1644
    %v1646 = vpop.f32.mrb[0].mxu0
    %v1647 = vadd.f32 0.0, %v1646
    %v1648 = vpop.f32.mrb[0].mxu0
    %v1649 = vadd.f32 0.0, %v1648
    %1650 = vmatprep.mubr.bf16.mxu0 0
    %1651 = vmatmul.mubr.bf16.gmra.mrb[0].mxu0 %v1486
    %v1652 = vpop.f32.mrb[0].mxu0
    %v1653 = vadd.f32 0.0, %v1652
    %v1654 = vpop.f32.mrb[0].mxu0
    %v1655 = vadd.f32 0.0, %v1654
    %v1656 = vpop.f32.mrb[0].mxu0
    %v1657 = vadd.f32 0.0, %v1656
    %v1658 = vpop.f32.mrb[0].mxu0
    %v1659 = vadd.f32 0.0, %v1658
    %1660 = vmatprep.mubr.bf16.mxu0 0
    %1661 = vmatmul.mubr.bf16.gmra.mrb[0].mxu0 %v1487
    %v1662 = vpop.f32.mrb[0].mxu0
    %v1663 = vadd.f32 0.0, %v1662
    %v1664 = vpop.f32.mrb[0].mxu0
    %v1665 = vadd.f32 0.0, %v1664
    %v1666 = vpop.f32.mrb[0].mxu0
    %v1667 = vadd.f32 0.0, %v1666
    %v1668 = vpop.f32.mrb[0].mxu0
    %v1669 = vadd.f32 0.0, %v1668
    %1670 = vmatprep.mubr.bf16.mxu0 0
    %1671 = vmatmul.mubr.bf16.gmra.mrb[0].mxu0 %v1488
    %v1672 = vpop.f32.mrb[0].mxu0
    %v1673 = vadd.f32 0.0, %v1672
    %v1674 = vpop.f32.mrb[0].mxu0
    %v1675 = vadd.f32 0.0, %v1674
    %v1676 = vpop.f32.mrb[0].mxu0
    %v1677 = vadd.f32 0.0, %v1676
    %v1678 = vpop.f32.mrb[0].mxu0
    %v1679 = vadd.f32 0.0, %v1678
    %1680 = vmatprep.mubr.bf16.mxu0 0
    %1681 = vmatmul.mubr.bf16.gmra.mrb[0].mxu0 %v1489
    %v1682 = vpop.f32.mrb[0].mxu0
    %v1683 = vadd.f32 0.0, %v1682
    %v1684 = vpop.f32.mrb[0].mxu0
    %v1685 = vadd.f32 0.0, %v1684
    %v1686 = vpop.f32.mrb[0].mxu0
    %v1687 = vadd.f32 0.0, %v1686
    %v1688 = vpop.f32.mrb[0].mxu0
    %v1689 = vadd.f32 0.0, %v1688
    %1690 = vmatprep.mubr.bf16.mxu0 0
    %1691 = vmatmul.mubr.bf16.gmra.mrb[0].mxu0 %v1490
    %v1692 = vpop.f32.mrb[0].mxu0
    %v1693 = vadd.f32 0.0, %v1692
    %v1694 = vpop.f32.mrb[0].mxu0
    %v1695 = vadd.f32 0.0, %v1694
    %v1696 = vpop.f32.mrb[0].mxu0
    %v1697 = vadd.f32 0.0, %v1696
    %v1698 = vpop.f32.mrb[0].mxu0
    %v1699 = vadd.f32 0.0, %v1698
    %1700 = vdwg.mxu0
    %1701 = vmatprep.subr.mxu0 0.0
    %1702 = vmatpush1.xpose.msra.mxu0 %v1623
    %1703 = vmatprep.subr.mxu0 0.0
    %1704 = vmatpush1.xpose.msra.mxu0 %v1627
    %1705 = vmatprep.subr.mxu0 0.0
    %1706 = vmatpush1.xpose.msra.mxu0 %v1633
    %1707 = vmatprep.subr.mxu0 0.0
    %1708 = vmatpush1.xpose.msra.mxu0 %v1637
    %1709 = vmatprep.subr.mxu0 0.0
    %1710 = vmatpush1.xpose.msra.mxu0 %v1643
    %1711 = vmatprep.subr.mxu0 0.0
    %1712 = vmatpush1.xpose.msra.mxu0 %v1647
    %1713 = vmatprep.subr.mxu0 0.0
    %1714 = vmatpush1.xpose.msra.mxu0 %v1653
    %1715 = vmatprep.subr.mxu0 0.0
    %1716 = vmatpush1.xpose.msra.mxu0 %v1657
    %1717 = vmatprep.subr.mxu0 0.0
    %1718 = vmatpush1.xpose.msra.mxu0 %v1663
    %1719 = vmatprep.subr.mxu0 0.0
    %1720 = vmatpush1.xpose.msra.mxu0 %v1667
    %1721 = vmatprep.subr.mxu0 0.0
    %1722 = vmatpush1.xpose.msra.mxu0 %v1673
    %1723 = vmatprep.subr.mxu0 0.0
    %1724 = vmatpush1.xpose.msra.mxu0 %v1677
    %1725 = vmatprep.subr.mxu0 0.0
    %1726 = vmatpush1.xpose.msra.mxu0 %v1683
    %1727 = vmatprep.subr.mxu0 0.0
    %1728 = vmatpush1.xpose.msra.mxu0 %v1687
    %1729 = vmatprep.subr.mxu0 0.0
    %1730 = vmatpush1.xpose.msra.mxu0 %v1693
    %1731 = vmatprep.subr.mxu0 0.0
    %1732 = vmatpush1.xpose.msra.mxu0 %v1697
    %1733 = vmatprep.subr.mxu0 0.0
    %1734 = vmatpush1.xpose.msra.mxu0 0.0
    %1735 = vmatprep.subr.mxu0 0.0
    %1736 = vmatpush1.xpose.msra.mxu0 0.0
    %1737 = vmatprep.subr.mxu0 0.0
    %1738 = vmatpush1.xpose.msra.mxu0 0.0
    %1739 = vmatprep.subr.mxu0 0.0
    %1740 = vmatpush1.xpose.msra.mxu0 0.0
    %1741 = vmatprep.subr.mxu0 0.0
    %1742 = vmatpush1.xpose.msra.mxu0 0.0
    %1743 = vmatprep.subr.mxu0 0.0
    %1744 = vmatpush1.xpose.msra.mxu0 0.0
    %1745 = vmatprep.subr.mxu0 0.0
    %1746 = vmatpush1.xpose.msra.mxu0 0.0
    %1747 = vmatprep.subr.mxu0 0.0
    %1748 = vmatpush1.xpose.msra.mxu0 0.0
    %1749 = vmatprep.subr.mxu0 0.0
    %1750 = vmatpush1.xpose.msra.mxu0 0.0
    %1751 = vmatprep.subr.mxu0 0.0
    %1752 = vmatpush1.xpose.msra.mxu0 0.0
    %1753 = vmatprep.subr.mxu0 0.0
    %1754 = vmatpush1.xpose.msra.mxu0 0.0
    %1755 = vmatprep.subr.mxu0 0.0
    %1756 = vmatpush1.xpose.msra.mxu0 0.0
    %1757 = vmatprep.subr.mxu0 0.0
    %1758 = vmatpush1.xpose.msra.mxu0 0.0
    %1759 = vmatprep.subr.mxu0 0.0
    %1760 = vmatpush1.xpose.msra.mxu0 0.0
    %1761 = vmatprep.subr.mxu0 0.0
    %1762 = vmatpush1.xpose.msra.mxu0 0.0
    %1763 = vmatprep.subr.mxu0 0.0
    %1764 = vmatpush1.xpose.msra.mxu0 0.0
    %1765 = vmatprep.mubr.f32.mxu0 0.0
    %1766 = vmatmul.mubr.f32.gmra.mrb[0].mxu0 %v1482
    %v1767 = vpop.f32.mrb[0].mxu0
    %v1768 = vadd.f32 0.0, %v1767
    %v1769 = vpop.f32.mrb[0].mxu0
    %1770 = vdwg.mxu0
    %1772 = vset.pattern.permute.xlu0 0
    %1773 = vperm.xlu0 %1772, %v1625
    %v1774 = vpop.permute.xlu0 %1773
    %1777 = vset.pattern.permute.xlu0 0
    %1778 = vperm.xlu0 %1777, %v1629
    %v1779 = vpop.permute.xlu0 %1778
    %1782 = vset.pattern.permute.xlu0 0
    %1783 = vperm.xlu0 %1782, %v1635
    %v1784 = vpop.permute.xlu0 %1783
    %1787 = vset.pattern.permute.xlu0 0
    %1788 = vperm.xlu0 %1787, %v1639
    %v1789 = vpop.permute.xlu0 %1788
    %1792 = vset.pattern.permute.xlu0 0
    %1793 = vperm.xlu0 %1792, %v1645
    %v1794 = vpop.permute.xlu0 %1793
    %1797 = vset.pattern.permute.xlu0 0
    %1798 = vperm.xlu0 %1797, %v1649
    %v1799 = vpop.permute.xlu0 %1798
    %1802 = vset.pattern.permute.xlu0 0
    %1803 = vperm.xlu0 %1802, %v1655
    %v1804 = vpop.permute.xlu0 %1803
    %1807 = vset.pattern.permute.xlu0 0
    %1808 = vperm.xlu0 %1807, %v1659
    %v1809 = vpop.permute.xlu0 %1808
    %1812 = vset.pattern.permute.xlu0 0
    %1813 = vperm.xlu0 %1812, %v1665
    %v1814 = vpop.permute.xlu0 %1813
    %1817 = vset.pattern.permute.xlu0 0
    %1818 = vperm.xlu0 %1817, %v1669
    %v1819 = vpop.permute.xlu0 %1818
    %1822 = vset.pattern.permute.xlu0 0
    %1823 = vperm.xlu0 %1822, %v1675
    %v1824 = vpop.permute.xlu0 %1823
    %1827 = vset.pattern.permute.xlu0 0
    %1828 = vperm.xlu0 %1827, %v1679
    %v1829 = vpop.permute.xlu0 %1828
    %1832 = vset.pattern.permute.xlu0 0
    %1833 = vperm.xlu0 %1832, %v1685
    %v1834 = vpop.permute.xlu0 %1833
    %1837 = vset.pattern.permute.xlu0 0
    %1838 = vperm.xlu0 %1837, %v1689
    %v1839 = vpop.permute.xlu0 %1838
    %1842 = vset.pattern.permute.xlu0 0
    %1843 = vperm.xlu0 %1842, %v1695
    %v1844 = vpop.permute.xlu0 %1843
    %1847 = vset.pattern.permute.xlu0 0
    %1848 = vperm.xlu0 %1847, %v1699
    %v1849 = vpop.permute.xlu0 %1848
    %v1851 = vlaneseq
    %v1852 = vshrl.u32 %v1851, 7
    %v1853 = vsub.s32 0, %v1852
    %v1854 = vrot.slane %v1768, %v1853
    %v1855 = vadd.f32 %v1774, %v1854
    %v1856 = vadd.f32 %v1779, %v1854
    %v1857 = vadd.f32 %v1784, %v1854
    %v1858 = vadd.f32 %v1789, %v1854
    %v1859 = vadd.f32 %v1794, %v1854
    %v1860 = vadd.f32 %v1799, %v1854
    %v1861 = vadd.f32 %v1804, %v1854
    %v1862 = vadd.f32 %v1809, %v1854
    %v1863 = vadd.f32 %v1814, %v1854
    %v1864 = vadd.f32 %v1819, %v1854
    %v1865 = vadd.f32 %v1824, %v1854
    %v1866 = vadd.f32 %v1829, %v1854
    %v1867 = vadd.f32 %v1834, %v1854
    %v1868 = vadd.f32 %v1839, %v1854
    %v1869 = vadd.f32 %v1844, %v1854
    %v1870 = vadd.f32 %v1849, %v1854
    %vm1871 = vcmp.ge.f32.partialorder %v1855, 0.0
    %vm1872 = vcmp.ge.f32.partialorder %v1856, 0.0
    %vm1873 = vcmp.ge.f32.partialorder %v1857, 0.0
    %vm1874 = vcmp.ge.f32.partialorder %v1858, 0.0
    %vm1875 = vcmp.ge.f32.partialorder %v1859, 0.0
    %vm1876 = vcmp.ge.f32.partialorder %v1860, 0.0
    %vm1877 = vcmp.ge.f32.partialorder %v1861, 0.0
    %vm1878 = vcmp.ge.f32.partialorder %v1862, 0.0
    %vm1879 = vcmp.ge.f32.partialorder %v1863, 0.0
    %vm1880 = vcmp.ge.f32.partialorder %v1864, 0.0
    %vm1881 = vcmp.ge.f32.partialorder %v1865, 0.0
    %vm1882 = vcmp.ge.f32.partialorder %v1866, 0.0
    %vm1883 = vcmp.ge.f32.partialorder %v1867, 0.0
    %vm1884 = vcmp.ge.f32.partialorder %v1868, 0.0
    %vm1885 = vcmp.ge.f32.partialorder %v1869, 0.0
    %vm1886 = vcmp.ge.f32.partialorder %v1870, 0.0
    %v1887 = vmul.f32 %v1855, 0.2
    %v1888 = vmul.f32 %v1856, 0.2
    %v1889 = vmul.f32 %v1857, 0.2
    %v1890 = vmul.f32 %v1858, 0.2
    %v1891 = vmul.f32 %v1859, 0.2
    %v1892 = vmul.f32 %v1860, 0.2
    %v1893 = vmul.f32 %v1861, 0.2
    %v1894 = vmul.f32 %v1862, 0.2
    %v1895 = vmul.f32 %v1863, 0.2
    %v1896 = vmul.f32 %v1864, 0.2
    %v1897 = vmul.f32 %v1865, 0.2
    %v1898 = vmul.f32 %v1866, 0.2
    %v1899 = vmul.f32 %v1867, 0.2
    %v1900 = vmul.f32 %v1868, 0.2
    %v1901 = vmul.f32 %v1869, 0.2
    %v1902 = vmul.f32 %v1870, 0.2
    %v1903 = vsel %vm1871, %v1855, %v1887
    %v1904 = vsel %vm1872, %v1856, %v1888
    %v1905 = vsel %vm1873, %v1857, %v1889
    %v1906 = vsel %vm1874, %v1858, %v1890
    %v1907 = vsel %vm1875, %v1859, %v1891
    %v1908 = vsel %vm1876, %v1860, %v1892
    %v1909 = vsel %vm1877, %v1861, %v1893
    %v1910 = vsel %vm1878, %v1862, %v1894
    %v1911 = vsel %vm1879, %v1863, %v1895
    %v1912 = vsel %vm1880, %v1864, %v1896
    %v1913 = vsel %vm1881, %v1865, %v1897
    %v1914 = vsel %vm1882, %v1866, %v1898
    %v1915 = vsel %vm1883, %v1867, %v1899
    %v1916 = vsel %vm1884, %v1868, %v1900
    %v1917 = vsel %vm1885, %v1869, %v1901
    %v1918 = vsel %vm1886, %v1870, %v1902
    %v1919 = vadd.f32 %v1903, %v121
    %v1920 = vadd.f32 %v1904, %v122
    %v1921 = vadd.f32 %v1905, %v123
    %v1922 = vadd.f32 %v1906, %v124
    %v1923 = vadd.f32 %v1907, %v125
    %v1924 = vadd.f32 %v1908, %v126
    %v1925 = vadd.f32 %v1909, %v127
    %v1926 = vadd.f32 %v1910, %v128
    %v1927 = vadd.f32 %v1911, %v129
    %v1928 = vadd.f32 %v1912, %v130
    %v1929 = vadd.f32 %v1913, %v131
    %v1930 = vadd.f32 %v1914, %v132
    %v1931 = vadd.f32 %v1915, %v133
    %v1932 = vadd.f32 %v1916, %v134
    %v1933 = vadd.f32 %v1917, %v135
    %v1934 = vadd.f32 %v1918, %v136
    %1935 = vmax.xlane.f32.xlu0 %v1919
    %v1936 = vpop.xlane.xlu0 %1935
    %1937 = vmax.xlane.f32.xlu0 %v1920
    %v1938 = vpop.xlane.xlu0 %1937
    %1939 = vmax.xlane.f32.xlu0 %v1921
    %v1940 = vpop.xlane.xlu0 %1939
    %1941 = vmax.xlane.f32.xlu0 %v1922
    %v1942 = vpop.xlane.xlu0 %1941
    %1943 = vmax.xlane.f32.xlu0 %v1923
    %v1944 = vpop.xlane.xlu0 %1943
    %1945 = vmax.xlane.f32.xlu0 %v1924
    %v1946 = vpop.xlane.xlu0 %1945
    %1947 = vmax.xlane.f32.xlu0 %v1925
    %v1948 = vpop.xlane.xlu0 %1947
    %1949 = vmax.xlane.f32.xlu0 %v1926
    %v1950 = vpop.xlane.xlu0 %1949
    %1951 = vmax.xlane.f32.xlu0 %v1927
    %v1952 = vpop.xlane.xlu0 %1951
    %1953 = vmax.xlane.f32.xlu0 %v1928
    %v1954 = vpop.xlane.xlu0 %1953
    %1955 = vmax.xlane.f32.xlu0 %v1929
    %v1956 = vpop.xlane.xlu0 %1955
    %1957 = vmax.xlane.f32.xlu0 %v1930
    %v1958 = vpop.xlane.xlu0 %1957
    %1959 = vmax.xlane.f32.xlu0 %v1931
    %v1960 = vpop.xlane.xlu0 %1959
    %1961 = vmax.xlane.f32.xlu0 %v1932
    %v1962 = vpop.xlane.xlu0 %1961
    %1963 = vmax.xlane.f32.xlu0 %v1933
    %v1964 = vpop.xlane.xlu0 %1963
    %1965 = vmax.xlane.f32.xlu0 %v1934
    %v1966 = vpop.xlane.xlu0 %1965
    %v1967 = vsub.f32 %v1919, %v1936
    %v1968 = vsub.f32 %v1920, %v1938
    %v1969 = vsub.f32 %v1921, %v1940
    %v1970 = vsub.f32 %v1922, %v1942
    %v1971 = vsub.f32 %v1923, %v1944
    %v1972 = vsub.f32 %v1924, %v1946
    %v1973 = vsub.f32 %v1925, %v1948
    %v1974 = vsub.f32 %v1926, %v1950
    %v1975 = vsub.f32 %v1927, %v1952
    %v1976 = vsub.f32 %v1928, %v1954
    %v1977 = vsub.f32 %v1929, %v1956
    %v1978 = vsub.f32 %v1930, %v1958
    %v1979 = vsub.f32 %v1931, %v1960
    %v1980 = vsub.f32 %v1932, %v1962
    %v1981 = vsub.f32 %v1933, %v1964
    %v1982 = vsub.f32 %v1934, %v1966
    %v1983 = vmul.f32 %v1967, 1.442695
    %v1984 = vpow.pop %v1983
    %v1985 = vmul.f32 %v1968, 1.442695
    %v1986 = vpow.pop %v1985
    %v1987 = vmul.f32 %v1969, 1.442695
    %v1988 = vpow.pop %v1987
    %v1989 = vmul.f32 %v1970, 1.442695
    %v1990 = vpow.pop %v1989
    %v1991 = vmul.f32 %v1971, 1.442695
    %v1992 = vpow.pop %v1991
    %v1993 = vmul.f32 %v1972, 1.442695
    %v1994 = vpow.pop %v1993
    %v1995 = vmul.f32 %v1973, 1.442695
    %v1996 = vpow.pop %v1995
    %v1997 = vmul.f32 %v1974, 1.442695
    %v1998 = vpow.pop %v1997
    %v1999 = vmul.f32 %v1975, 1.442695
    %v2000 = vpow.pop %v1999
    %v2001 = vmul.f32 %v1976, 1.442695
    %v2002 = vpow.pop %v2001
    %v2003 = vmul.f32 %v1977, 1.442695
    %v2004 = vpow.pop %v2003
    %v2005 = vmul.f32 %v1978, 1.442695
    %v2006 = vpow.pop %v2005
    %v2007 = vmul.f32 %v1979, 1.442695
    %v2008 = vpow.pop %v2007
    %v2009 = vmul.f32 %v1980, 1.442695
    %v2010 = vpow.pop %v2009
    %v2011 = vmul.f32 %v1981, 1.442695
    %v2012 = vpow.pop %v2011
    %v2013 = vmul.f32 %v1982, 1.442695
    %v2014 = vpow.pop %v2013
    %2015 = vadd.xlane.f32.xlu0 %v1984
    %v2016 = vpop.xlane.xlu0 %2015
    %2017 = vadd.xlane.f32.xlu0 %v2000
    %v2018 = vpop.xlane.xlu0 %2017
    %v2019 = vrcp.pop %v2016
    %v2020 = vrcp.pop %v2018
    %v2021 = vmul.f32 %v2016, %v2019
    %v2022 = vmul.f32 %v2018, %v2020
    %v2023 = vsub.f32 2.0, %v2021
    %v2024 = vsub.f32 2.0, %v2022
    %v2025 = vmul.f32 %v2019, %v2023
    %v2026 = vmul.f32 %v2020, %v2024
    %v2027 = vpack.c.bf16 %v1986, %v1984
    %v2028 = vpack.c.bf16 %v1990, %v1988
    %v2029 = vpack.c.bf16 %v1994, %v1992
    %v2030 = vpack.c.bf16 %v1998, %v1996
    %v2031 = vpack.c.bf16 %v2002, %v2000
    %v2032 = vpack.c.bf16 %v2006, %v2004
    %v2033 = vpack.c.bf16 %v2010, %v2008
    %v2034 = vpack.c.bf16 %v2014, %v2012
    %v2035 = vpack.c.bf16 %v1627, %v1623
    %v2036 = vpack.c.bf16 %v1637, %v1633
    %v2037 = vpack.c.bf16 %v1647, %v1643
    %v2038 = vpack.c.bf16 %v1657, %v1653
    %v2039 = vpack.c.bf16 %v1667, %v1663
    %v2040 = vpack.c.bf16 %v1677, %v1673
    %v2041 = vpack.c.bf16 %v1687, %v1683
    %v2042 = vpack.c.bf16 %v1697, %v1693
    %2043 = vmatprep.subr.bf16.mxu0 0
    %2044 = vmatpush1.bf16.msra.mxu0 %v2035
    %2045 = vmatprep.subr.bf16.mxu0 0
    %2046 = vmatpush1.bf16.msra.mxu0 %v2036
    %2047 = vmatprep.subr.bf16.mxu0 0
    %2048 = vmatpush1.bf16.msra.mxu0 %v2037
    %2049 = vmatprep.subr.bf16.mxu0 0
    %2050 = vmatpush1.bf16.msra.mxu0 %v2038
    %2051 = vmatprep.subr.bf16.mxu0 0
    %2052 = vmatpush1.bf16.msra.mxu0 %v2039
    %2053 = vmatprep.subr.bf16.mxu0 0
    %2054 = vmatpush1.bf16.msra.mxu0 %v2040
    %2055 = vmatprep.subr.bf16.mxu0 0
    %2056 = vmatpush1.bf16.msra.mxu0 %v2041
    %2057 = vmatprep.subr.bf16.mxu0 0
    %2058 = vmatpush1.bf16.msra.mxu0 %v2042
    %2059 = vmatprep.subr.bf16.mxu0 0
    %2060 = vmatpush1.bf16.msra.mxu0 0
    %2061 = vmatprep.subr.bf16.mxu0 0
    %2062 = vmatpush1.bf16.msra.mxu0 0
    %2063 = vmatprep.subr.bf16.mxu0 0
    %2064 = vmatpush1.bf16.msra.mxu0 0
    %2065 = vmatprep.subr.bf16.mxu0 0
    %2066 = vmatpush1.bf16.msra.mxu0 0
    %2067 = vmatprep.subr.bf16.mxu0 0
    %2068 = vmatpush1.bf16.msra.mxu0 0
    %2069 = vmatprep.subr.bf16.mxu0 0
    %2070 = vmatpush1.bf16.msra.mxu0 0
    %2071 = vmatprep.subr.bf16.mxu0 0
    %2072 = vmatpush1.bf16.msra.mxu0 0
    %2073 = vmatprep.subr.bf16.mxu0 0
    %2074 = vmatpush1.bf16.msra.mxu0 0
    %2075 = vmatprep.mubr.bf16.mxu0 0
    %2076 = vmatmul.mubr.bf16.gmra.mrb[0].mxu0 %v2027
    %v2077 = vpop.f32.mrb[0].mxu0
    %v2078 = vadd.f32 0.0, %v2077
    %v2079 = vpop.f32.mrb[0].mxu0
    %v2080 = vpop.f32.mrb[0].mxu0
    %v2081 = vpop.f32.mrb[0].mxu0
    %2082 = vmatprep.mubr.bf16.mxu0 0
    %2083 = vmatmul.mubr.bf16.gmra.mrb[0].mxu0 %v2028
    %v2084 = vpop.f32.mrb[0].mxu0
    %v2085 = vpop.f32.mrb[0].mxu0
    %v2086 = vpop.f32.mrb[0].mxu0
    %v2087 = vpop.f32.mrb[0].mxu0
    %2088 = vmatprep.mubr.bf16.mxu0 0
    %2089 = vmatmul.mubr.bf16.gmra.mrb[0].mxu0 %v2029
    %v2090 = vpop.f32.mrb[0].mxu0
    %v2091 = vpop.f32.mrb[0].mxu0
    %v2092 = vpop.f32.mrb[0].mxu0
    %v2093 = vpop.f32.mrb[0].mxu0
    %2094 = vmatprep.mubr.bf16.mxu0 0
    %2095 = vmatmul.mubr.bf16.gmra.mrb[0].mxu0 %v2030
    %v2096 = vpop.f32.mrb[0].mxu0
    %v2097 = vpop.f32.mrb[0].mxu0
    %v2098 = vpop.f32.mrb[0].mxu0
    %v2099 = vpop.f32.mrb[0].mxu0
    %2100 = vmatprep.mubr.bf16.mxu0 0
    %2101 = vmatmul.mubr.bf16.gmra.mrb[0].mxu0 %v2031
    %v2102 = vpop.f32.mrb[0].mxu0
    %v2103 = vadd.f32 0.0, %v2102
    %v2104 = vpop.f32.mrb[0].mxu0
    %v2105 = vpop.f32.mrb[0].mxu0
    %v2106 = vpop.f32.mrb[0].mxu0
    %2107 = vmatprep.mubr.bf16.mxu0 0
    %2108 = vmatmul.mubr.bf16.gmra.mrb[0].mxu0 %v2032
    %v2109 = vpop.f32.mrb[0].mxu0
    %v2110 = vpop.f32.mrb[0].mxu0
    %v2111 = vpop.f32.mrb[0].mxu0
    %v2112 = vpop.f32.mrb[0].mxu0
    %2113 = vmatprep.mubr.bf16.mxu0 0
    %2114 = vmatmul.mubr.bf16.gmra.mrb[0].mxu0 %v2033
    %v2115 = vpop.f32.mrb[0].mxu0
    %v2116 = vpop.f32.mrb[0].mxu0
    %v2117 = vpop.f32.mrb[0].mxu0
    %v2118 = vpop.f32.mrb[0].mxu0
    %2119 = vmatprep.mubr.bf16.mxu0 0
    %2120 = vmatmul.mubr.bf16.gmra.mrb[0].mxu0 %v2034
    %v2121 = vpop.f32.mrb[0].mxu0
    %v2122 = vpop.f32.mrb[0].mxu0
    %v2123 = vpop.f32.mrb[0].mxu0
    %v2124 = vpop.f32.mrb[0].mxu0
    %2125 = vdwg.mxu0
    %v2126 = vmul.f32 %v2078, %v2025
    %v2127 = vmul.f32 %v2103, %v2026
    %v2128 = vlaneseq
    %v2129 = vshrl.u32 %v2128, 7
    %v2130 = vsub.s32 0, %v2129
    %v2131 = vrot.slane %v1481, %v2130
    %v2132 = vadd.f32 %v2126, %v2131
    %v2133 = vadd.f32 %v2127, %v2131
    %v2134 = vmax.f32 %v2132, 0.0
    %v2135 = vmax.f32 %v2133, 0.0
    %v2137 = vrot.slane %v2135, 7
    %vm2139 = vcmask 1040384
    %v2140 = vsel %vm2139, %v2134, %v2137
    %v2142 = vrot.slane %v2134, 1
    %v2144 = vsel %vm2139, %v2142, %v2135
    %v2145 = vpack.c.bf16 %v2140, %v2140
    %v2146 = vpack.c.bf16 %v2144, %v2144
    %2147 = vmatprep.subr.bf16.mxu0 0
    %2148 = vmatpush1.bf16.msra.mxu0 %v373
    %2149 = vmatprep.subr.bf16.mxu0 0
    %2150 = vmatpush1.bf16.msra.mxu0 %v374
    %2151 = vmatprep.subr.bf16.mxu0 0
    %2152 = vmatpush1.bf16.msra.mxu0 %v375
    %2153 = vmatprep.subr.bf16.mxu0 0
    %2154 = vmatpush1.bf16.msra.mxu0 %v376
    %2155 = vmatprep.subr.bf16.mxu0 0
    %2156 = vmatpush1.bf16.msra.mxu0 %v377
    %2157 = vmatprep.subr.bf16.mxu0 0
    %2158 = vmatpush1.bf16.msra.mxu0 %v378
    %2159 = vmatprep.subr.bf16.mxu0 0
    %2160 = vmatpush1.bf16.msra.mxu0 %v379
    %2161 = vmatprep.subr.bf16.mxu0 0
    %2162 = vmatpush1.bf16.msra.mxu0 %v380
    %2163 = vmatprep.subr.bf16.mxu0 0
    %2164 = vmatpush1.bf16.msra.mxu0 %v381
    %2165 = vmatprep.subr.bf16.mxu0 0
    %2166 = vmatpush1.bf16.msra.mxu0 %v382
    %2167 = vmatprep.subr.bf16.mxu0 0
    %2168 = vmatpush1.bf16.msra.mxu0 %v383
    %2169 = vmatprep.subr.bf16.mxu0 0
    %2170 = vmatpush1.bf16.msra.mxu0 %v384
    %2171 = vmatprep.subr.bf16.mxu0 0
    %2172 = vmatpush1.bf16.msra.mxu0 %v385
    %2173 = vmatprep.subr.bf16.mxu0 0
    %2174 = vmatpush1.bf16.msra.mxu0 %v386
    %2175 = vmatprep.subr.bf16.mxu0 0
    %2176 = vmatpush1.bf16.msra.mxu0 %v387
    %2177 = vmatprep.subr.bf16.mxu0 0
    %2178 = vmatpush1.bf16.msra.mxu0 %v388
    %2179 = vmatprep.mubr.bf16.mxu0 %v2146
    %2180 = vmatmul.mubr.bf16.gmra.mrb[0].mxu0 %v2145
    %v2181 = vpop.f32.mrb[0].mxu0
    %v2182 = vadd.f32 %v140, %v2181
    %v2183 = vpop.f32.mrb[0].mxu0
    %v2184 = vpop.f32.mrb[0].mxu0
    %v2185 = vpop.f32.mrb[0].mxu0
    %2186 = vdwg.mxu0
    %vm2187 = vcmask 1041408
    %v2188 = vsel %vm2187, %v2182, 0.0
    %2189 = vadd.xlane.f32.xlu0 %v2188
    %v2190 = vpop.xlane.xlu0 %2189
    %v2191 = vrcp.pop 128.0
    %v2192 = vmul.f32 %v2190, %v2191
    %v2193 = vsub.f32 %v2182, %v2192
    %v2194 = vmul.f32 %v2193, %v2193
    %v2195 = vsel %vm2187, %v2194, 0.0
    %2196 = vadd.xlane.f32.xlu0 %v2195
    %v2197 = vpop.xlane.xlu0 %2196
    %v2198 = vmul.f32 %v2197, %v2191
    %v2199 = vadd.f32 %v2198, 1e-05
    %v2200 = vrsqrt.pop %v2199
    %v2201 = vmul.f32 %v2193, %v2200
    %v2202 = vlaneseq
    %v2203 = vshrl.u32 %v2202, 7
    %v2204 = vsub.s32 0, %v2203
    %v2205 = vrot.slane %v103, %v2204
    %v2206 = vmul.f32 %v2201, %v2205
    %v2207 = vlaneseq
    %v2208 = vshrl.u32 %v2207, 7
    %v2209 = vsub.s32 0, %v2208
    %v2210 = vrot.slane %v104, %v2209
    %v2211 = vadd.f32 %v2206, %v2210
    %v2212 = vmax.f32 %v2211, 0.0
    %2213 = vst [vmem:[#allocation2] sm:$0x3] %v2212
    // Predicated region
    $region22: #{basic_gat_forward.1} parent=1 // pred_check
      _
    $region23: #{basic_gat_forward.1} parent=1 // pred_check_branch
      %2215 = sbr.rel (0) target = $region25
    $region24: #{basic_gat_forward.1} parent=1 // pred_region
      %s2217 = ssub.s32 32, 32
      %2218 = vsyncadd [#allocation3], %s2217
      %s2220 = sshll.u32 [#allocation2], 4
      %s2221 = int_to_ptr.vmem [resolvable:$true] %s2220
      %2223 = dma.vmem_to_hbm [thread:$0]  %s2221, 32, %s5, [#allocation3]
    $region25: #{basic_gat_forward.1} parent=1 // pred_fallthru
      _
    // Predicated region
    $region26: #{basic_gat_forward.1} parent=1 // pred_check
      _
    $region27: #{basic_gat_forward.1} parent=1 // pred_check_branch
      %2225 = sbr.rel (0) target = $region29
    $region28: #{basic_gat_forward.1} parent=1 // pred_region
      %2226 = dma.done [#allocation3], 32
    $region29: #{basic_gat_forward.1} parent=1 // pred_fallthru
      _
    %2227 = vsyncpa [#allocation3], 1

</llo_original>
